<compile_context>
chip_gen: v6e
topology: v6e:2x2x1
jax: 0.10.0
libtpu: 0.0.40
codegen_flags: <defaults>
</compile_context>

<pallas_src>
import functools
import math

import jax
import jax.numpy as jnp
from jax import lax
from jax.experimental import pallas as pl
from jax.experimental.pallas import tpu as pltpu


def _round_up(x, m):
    return ((x + m - 1) // m) * m


# ----------------------------------------------------------------------------
# Kernel: one decoder time step per grid index t.
# ----------------------------------------------------------------------------
def _abcgru_step_kernel(h0_ref, wx_ref, wha2_ref, wrz_ref, whh_ref, wy_ref,
                        bha2_ref, brz_ref, bc_ref, by_ref,
                        out_ref, h_scr, y_scr, *, n_valid):
    t = pl.program_id(0)

    @pl.when(t == 0)
    def _():
        h_scr[...] = h0_ref[...]
        y_scr[...] = jnp.zeros_like(y_scr)   # X_cur starts as zeros(B, N, C)

    B, Np, Hp = h_scr.shape
    Cp = y_scr.shape[-1]
    BN = B * Np

    x2 = y_scr[...].reshape(BN, Cp)          # X_cur = previous step's y
    h2 = h_scr[...].reshape(BN, Hp)          # H_pre
    xb = x2.astype(jnp.bfloat16)
    hb = h2.astype(jnp.bfloat16)

    # Fused X projection: [W_ha1 | W_xh]  (W_xh bias folded into bc)
    px = jnp.dot(xb, wx_ref[0], preferred_element_type=jnp.float32)   # (BN, 2Hp)
    lhs = px[:, :Hp]                                                  # attention lhs
    xh = px[:, Hp:]                                                   # candidate x-part

    # Attention rhs: W_ha2(H_pre) + b_ha2
    rhs = jnp.dot(hb, wha2_ref[0], preferred_element_type=jnp.float32) + bha2_ref[0]

    lhs3 = lhs.reshape(B, Np, Hp).astype(jnp.bfloat16)
    rhs3 = rhs.reshape(B, Np, Hp).astype(jnp.bfloat16)
    s = jnp.einsum('bnh,bmh->bnm', lhs3, rhs3,
                   preferred_element_type=jnp.float32)                # (B, Np, Np)
    s = jnp.where(s >= 0, s, 0.01 * s)                                # leaky_relu
    # Mask padded node columns before the softmax (no-op when Np == N).
    col_ok = lax.broadcasted_iota(jnp.int32, (1, 1, Np), 2) < n_valid
    s = jnp.where(col_ok, s, -1e30)
    s = s - jnp.max(s, axis=-1, keepdims=True)
    e = jnp.exp(s)
    p = e / jnp.sum(e, axis=-1, keepdims=True)                        # softmax over nodes

    a = jnp.einsum('bnm,bmc->bnc', p.astype(jnp.bfloat16),
                   xb.reshape(B, Np, Cp),
                   preferred_element_type=jnp.float32)                # S_norm @ X_cur
    a2 = a.reshape(BN, Cp).astype(jnp.bfloat16)

    # Fused gate projection: [W_xr | W_xz]
    rz = jnp.dot(a2, wrz_ref[0], preferred_element_type=jnp.float32) + brz_ref[0]
    r = jax.nn.sigmoid(rz[:, :Hp])
    z = jax.nn.sigmoid(rz[:, Hp:])

    hh = jnp.dot((r * h2).astype(jnp.bfloat16), whh_ref[0],
                 preferred_element_type=jnp.float32)
    cand = jnp.tanh(xh + hh + bc_ref[0])

    h_new = z * h2 + (1.0 - z) * cand                                 # (BN, Hp)
    y_new = jnp.dot(h_new.astype(jnp.bfloat16), wy_ref[0],
                    preferred_element_type=jnp.float32) + by_ref[0]   # (BN, Cp)

    h_scr[...] = h_new.reshape(B, Np, Hp)
    y_scr[...] = y_new.reshape(B, Np, Cp)
    out_ref[...] = y_new.reshape(1, B, Np, Cp)


# ----------------------------------------------------------------------------
# Wrapper: pad / fuse / bf16-cast the stacked per-step weights and launch.
# ----------------------------------------------------------------------------
def _pack_params(params, C, Hd, Cp, Hp):
    tr = lambda w: jnp.swapaxes(w, -1, -2)            # torch (out,in) -> (in,out)

    def padw(w, rows, cols):
        _, r, c = w.shape
        return jnp.pad(w, ((0, 0), (0, rows - r), (0, cols - c)))

    def padb(b, width):
        return jnp.pad(b, ((0, 0), (0, width - b.shape[-1])))[:, None, :]

    w_ha1 = padw(tr(params['W_ha1']), Cp, Hp)
    w_xh = padw(tr(params['W_xh']), Cp, Hp)
    wx = jnp.concatenate([w_ha1, w_xh], axis=-1).astype(jnp.bfloat16)   # (T, Cp, 2Hp)

    wha2 = padw(tr(params['W_ha2']), Hp, Hp).astype(jnp.bfloat16)
    w_xr = padw(tr(params['W_xr']), Cp, Hp)
    w_xz = padw(tr(params['W_xz']), Cp, Hp)
    wrz = jnp.concatenate([w_xr, w_xz], axis=-1).astype(jnp.bfloat16)   # (T, Cp, 2Hp)
    whh = padw(tr(params['W_hh']), Hp, Hp).astype(jnp.bfloat16)
    wy = padw(tr(params['W_y']), Hp, Cp).astype(jnp.bfloat16)

    b_ha2 = padb(params['b_ha2'], Hp).astype(jnp.float32)
    b_rz = jnp.concatenate([padb(params['b_xr'], Hp),
                            padb(params['b_xz'], Hp)], axis=-1).astype(jnp.float32)
    b_c = padb(params['b_xh'] + params['b_hh'], Hp).astype(jnp.float32)
    b_y = padb(params['b_y'], Cp).astype(jnp.float32)

    return (wx, wha2, wrz, whh, wy, b_ha2, b_rz, b_c, b_y)


def abcgru_decoder_pallas(X, H, params):
    B, N, _, C = X.shape            # X is only used for its shape (as in PyTorch)
    Hd = H.shape[-1]
    T = params['W_xr'].shape[0]     # pre_length

    Cp = _round_up(C, 128)
    Hp = _round_up(Hd, 128)
    Np = _round_up(N, 8)

    packed = _pack_params(params, C, Hd, Cp, Hp)
    h0 = jnp.pad(H.astype(jnp.float32), ((0, 0), (0, Np - N), (0, Hp - Hd)))

    kernel = functools.partial(_abcgru_step_kernel, n_valid=N)

    def wspec(d1, d2):
        return pl.BlockSpec((1, d1, d2), lambda t: (t, 0, 0))

    out = pl.pallas_call(
        kernel,
        out_shape=jax.ShapeDtypeStruct((T, B, Np, Cp), jnp.float32),
        grid=(T,),
        in_specs=[
            pl.BlockSpec((B, Np, Hp), lambda t: (0, 0, 0)),   # H0 (VMEM-resident)
            wspec(Cp, 2 * Hp),   # [W_ha1 | W_xh]
            wspec(Hp, Hp),       # W_ha2
            wspec(Cp, 2 * Hp),   # [W_xr | W_xz]
            wspec(Hp, Hp),       # W_hh
            wspec(Hp, Cp),       # W_y
            wspec(1, Hp),        # b_ha2
            wspec(1, 2 * Hp),    # [b_xr | b_xz]
            wspec(1, Hp),        # b_xh + b_hh
            wspec(1, Cp),        # b_y
        ],
        out_specs=pl.BlockSpec((1, B, Np, Cp), lambda t: (t, 0, 0, 0)),
        scratch_shapes=[
            pltpu.VMEM((B, Np, Hp), jnp.float32),   # recurrent H
            pltpu.VMEM((B, Np, Cp), jnp.float32),   # fed-back y (= next X_cur)
        ],
        compiler_params=pltpu.CompilerParams(
            dimension_semantics=("arbitrary",)),
    )(h0, *packed)

    ans = out[:, :, :N, :C]                       # strip padding -> (T, B, N, C)
    return jnp.transpose(ans, (1, 2, 0, 3))       # (B, N, pre_length, C)


# ----------------------------------------------------------------------------
# Pure-JAX f32 reference mirroring the PyTorch forward exactly.
# ----------------------------------------------------------------------------
def abcgru_decoder_ref(X, H, params):
    B, N, _, C = X.shape
    T = params['W_xr'].shape[0]
    y = jnp.zeros((B, N, C), jnp.float32)
    h = H.astype(jnp.float32)
    outs = []
    for t in range(T):
        lhs = y @ params['W_ha1'][t].T
        rhs = h @ params['W_ha2'][t].T + params['b_ha2'][t]
        s = jnp.einsum('bnh,bmh->bnm', lhs, rhs)
        s = jnp.where(s >= 0, s, 0.01 * s)                       # leaky_relu
        sn = jax.nn.softmax(s, axis=-1)
        a = jnp.einsum('bnm,bmc->bnc', sn, y)
        rt = jax.nn.sigmoid(a @ params['W_xr'][t].T + params['b_xr'][t])
        zt = jax.nn.sigmoid(a @ params['W_xz'][t].T + params['b_xz'][t])
        cand = jnp.tanh(y @ params['W_xh'][t].T + params['b_xh'][t]
                        + (rt * h) @ params['W_hh'][t].T + params['b_hh'][t])
        h = zt * h + (1.0 - zt) * cand
        y = h @ params['W_y'][t].T + params['b_y'][t]
        outs.append(y)
    return jnp.stack(outs, axis=2)   # (B, N, pre_length, C)


def init_params(key, pre_length, input_size, hidden_size):
    """Stacked per-timestep params, PyTorch nn.Linear convention:
    weight (out,in), bias (out,), U(-1/sqrt(fan_in), 1/sqrt(fan_in))."""
    def linear(k, fan_in, fan_out, bias=True):
        kw, kb = jax.random.split(k)
        bound = 1.0 / math.sqrt(fan_in)
        w = jax.random.uniform(kw, (pre_length, fan_out, fan_in), jnp.float32,
                               -bound, bound)
        b = (jax.random.uniform(kb, (pre_length, fan_out), jnp.float32,
                                -bound, bound) if bias else None)
        return w, b

    ks = jax.random.split(key, 7)
    W_xr, b_xr = linear(ks[0], input_size, hidden_size)
    W_xz, b_xz = linear(ks[1], input_size, hidden_size)
    W_xh, b_xh = linear(ks[2], input_size, hidden_size)
    W_hh, b_hh = linear(ks[3], hidden_size, hidden_size)
    W_ha1, _ = linear(ks[4], input_size, hidden_size, bias=False)
    W_ha2, b_ha2 = linear(ks[5], hidden_size, hidden_size)
    W_y, b_y = linear(ks[6], hidden_size, input_size)
    # W_hr / W_hz exist in the PyTorch module but are unused in forward().
    return dict(W_xr=W_xr, b_xr=b_xr, W_xz=W_xz, b_xz=b_xz,
                W_xh=W_xh, b_xh=b_xh, W_hh=W_hh, b_hh=b_hh,
                W_ha1=W_ha1, W_ha2=W_ha2, b_ha2=b_ha2, W_y=W_y, b_y=b_y)


if __name__ == "__main__":
    batch, nodes, channels, hidden, pre_length = 2, 8, 16, 32, 4

    key = jax.random.PRNGKey(0)
    k_x, k_h, k_p = jax.random.split(key, 3)
    X = jax.random.normal(k_x, (batch, nodes, pre_length, channels), jnp.float32)
    H = jax.random.normal(k_h, (batch, nodes, hidden), jnp.float32)
    params = init_params(k_p, pre_length, channels, hidden)

    out = abcgru_decoder_pallas(X, H, params)
    out = jax.block_until_ready(out)

    ref = abcgru_decoder_ref(X, H, params)
    assert out.shape == (batch, nodes, pre_length, channels), out.shape
    # bf16 MXU operands with f32 accumulation -> widened tolerance vs f32 ref.
    assert jnp.allclose(out, ref, atol=5e-2, rtol=5e-2), (
        "mismatch vs reference, max abs err = %g"
        % float(jnp.max(jnp.abs(out - ref))))

    print("KERNEL_OK")
</pallas_src>

<mosaic_0001>
module attributes {stable_mosaic.version = 11 : i64} {
  func.func @_abcgru_step_kernel(%arg0: i32, %arg1: memref<2x8x128xf32, #tpu.memory_space<vmem>>, %arg2: memref<1x128x256xbf16, #tpu.memory_space<vmem>>, %arg3: memref<1x128x128xbf16, #tpu.memory_space<vmem>>, %arg4: memref<1x128x256xbf16, #tpu.memory_space<vmem>>, %arg5: memref<1x128x128xbf16, #tpu.memory_space<vmem>>, %arg6: memref<1x128x128xbf16, #tpu.memory_space<vmem>>, %arg7: memref<1x1x128xf32, #tpu.memory_space<vmem>>, %arg8: memref<1x1x256xf32, #tpu.memory_space<vmem>>, %arg9: memref<1x1x128xf32, #tpu.memory_space<vmem>>, %arg10: memref<1x1x128xf32, #tpu.memory_space<vmem>>, %arg11: memref<1x2x8x128xf32, #tpu.memory_space<vmem>>, %arg12: memref<2x8x128xf32, #tpu.memory_space<vmem>>, %arg13: memref<2x8x128xf32, #tpu.memory_space<vmem>>) attributes {dimension_semantics = [#tpu.dimension_semantics<arbitrary>], iteration_bounds = array<i64: 4>, scalar_prefetch = 0 : i64, scratch_operands = 2 : i64, tpu.core_type = #tpu.core_type<tc>, window_params = [{pipeline_mode = #tpu.pipeline_mode<synchronous>, transform_indices = @transform_0, window_bounds = array<i64: 2, 8, 128>}, {transform_indices = @transform_1, window_bounds = array<i64: 1, 128, 256>}, {transform_indices = @transform_2, window_bounds = array<i64: 1, 128, 128>}, {transform_indices = @transform_3, window_bounds = array<i64: 1, 128, 256>}, {transform_indices = @transform_4, window_bounds = array<i64: 1, 128, 128>}, {transform_indices = @transform_5, window_bounds = array<i64: 1, 128, 128>}, {transform_indices = @transform_6, window_bounds = array<i64: 1, 1, 128>}, {transform_indices = @transform_7, window_bounds = array<i64: 1, 1, 256>}, {transform_indices = @transform_8, window_bounds = array<i64: 1, 1, 128>}, {transform_indices = @transform_9, window_bounds = array<i64: 1, 1, 128>}, {transform_indices = @transform_10, window_bounds = array<i64: 1, 2, 8, 128>}]} {
    %c0_i32 = arith.constant 0 : i32
    %0 = arith.cmpi eq, %arg0, %c0_i32 : i32
    %1 = arith.extui %0 : i1 to i32
    %c0_i32_0 = arith.constant 0 : i32
    %2 = arith.cmpi ne, %1, %c0_i32_0 : i32
    scf.if %2 {
      %c0_57 = arith.constant 0 : index
      %c0_58 = arith.constant 0 : index
      %c0_59 = arith.constant 0 : index
      %101 = vector.load %arg1[%c0_57, %c0_58, %c0_59] : memref<2x8x128xf32, #tpu.memory_space<vmem>>, vector<2x8x128xf32>
      %c0_60 = arith.constant 0 : index
      %c0_61 = arith.constant 0 : index
      %c0_62 = arith.constant 0 : index
      %102 = vector.load %arg12[%c0_60, %c0_61, %c0_62] : memref<2x8x128xf32, #tpu.memory_space<vmem>>, vector<2x8x128xf32>
      tpu.vector_store %arg12[%c0_60, %c0_61, %c0_62], %101 {strides = array<i32>} : memref<2x8x128xf32, #tpu.memory_space<vmem>>, vector<2x8x128xf32>,
      %cst_63 = arith.constant 0.000000e+00 : f32
      %103 = vector.broadcast %cst_63 : f32 to vector<2x8x128xf32>
      %c0_64 = arith.constant 0 : index
      %c0_65 = arith.constant 0 : index
      %c0_66 = arith.constant 0 : index
      %104 = vector.load %arg13[%c0_64, %c0_65, %c0_66] : memref<2x8x128xf32, #tpu.memory_space<vmem>>, vector<2x8x128xf32>
      tpu.vector_store %arg13[%c0_64, %c0_65, %c0_66], %103 {strides = array<i32>} : memref<2x8x128xf32, #tpu.memory_space<vmem>>, vector<2x8x128xf32>,
    } else {
    }
    %c0 = arith.constant 0 : index
    %c0_1 = arith.constant 0 : index
    %c0_2 = arith.constant 0 : index
    %3 = vector.load %arg13[%c0, %c0_1, %c0_2] : memref<2x8x128xf32, #tpu.memory_space<vmem>>, vector<2x8x128xf32>
    %4 = vector.shape_cast %3 : vector<2x8x128xf32> to vector<16x128xf32>
    %c0_3 = arith.constant 0 : index
    %c0_4 = arith.constant 0 : index
    %c0_5 = arith.constant 0 : index
    %5 = vector.load %arg12[%c0_3, %c0_4, %c0_5] : memref<2x8x128xf32, #tpu.memory_space<vmem>>, vector<2x8x128xf32>
    %6 = vector.shape_cast %5 : vector<2x8x128xf32> to vector<16x128xf32>
    %7 = arith.truncf %4 : vector<16x128xf32> to vector<16x128xbf16>
    %8 = arith.truncf %6 : vector<16x128xf32> to vector<16x128xbf16>
    %c0_6 = arith.constant 0 : index
    %c0_7 = arith.constant 0 : index
    %c0_8 = arith.constant 0 : index
    %9 = vector.load %arg2[%c0_6, %c0_7, %c0_8] : memref<1x128x256xbf16, #tpu.memory_space<vmem>>, vector<1x128x256xbf16>
    %10 = vector.shape_cast %9 : vector<1x128x256xbf16> to vector<128x256xbf16>
    %cst = arith.constant dense<0.000000e+00> : vector<16x256xf32>
    %11 = tpu.matmul %7, %10, %cst {dimension_numbers = #tpu.dot_dimension_numbers<[1], [0], [0], [1], [0, 0, 1, 1], [], []>} : vector<16x128xbf16>, vector<128x256xbf16>, vector<16x256xf32> -> vector<16x256xf32>
    %12 = vector.extract_strided_slice %11 {offsets = [0, 0], sizes = [16, 128], strides = [1, 1]} : vector<16x256xf32> to vector<16x128xf32>
    %13 = vector.extract_strided_slice %11 {offsets = [0, 128], sizes = [16, 128], strides = [1, 1]} : vector<16x256xf32> to vector<16x128xf32>
    %c0_9 = arith.constant 0 : index
    %c0_10 = arith.constant 0 : index
    %c0_11 = arith.constant 0 : index
    %14 = vector.load %arg3[%c0_9, %c0_10, %c0_11] : memref<1x128x128xbf16, #tpu.memory_space<vmem>>, vector<1x128x128xbf16>
    %15 = vector.shape_cast %14 : vector<1x128x128xbf16> to vector<128x128xbf16>
    %cst_12 = arith.constant dense<0.000000e+00> : vector<16x128xf32>
    %16 = tpu.matmul %8, %15, %cst_12 {dimension_numbers = #tpu.dot_dimension_numbers<[1], [0], [0], [1], [0, 0, 1, 1], [], []>} : vector<16x128xbf16>, vector<128x128xbf16>, vector<16x128xf32> -> vector<16x128xf32>
    %c0_13 = arith.constant 0 : index
    %c0_14 = arith.constant 0 : index
    %c0_15 = arith.constant 0 : index
    %17 = vector.load %arg7[%c0_13, %c0_14, %c0_15] : memref<1x1x128xf32, #tpu.memory_space<vmem>>, vector<1x1x128xf32>
    %18 = vector.shape_cast %17 : vector<1x1x128xf32> to vector<1x128xf32>
    %19 = vector.broadcast %18 : vector<1x128xf32> to vector<16x128xf32>
    %20 = arith.addf %16, %19 : vector<16x128xf32>
    %21 = vector.shape_cast %12 : vector<16x128xf32> to vector<2x8x128xf32>
    %22 = arith.truncf %21 : vector<2x8x128xf32> to vector<2x8x128xbf16>
    %23 = vector.shape_cast %20 : vector<16x128xf32> to vector<2x8x128xf32>
    %24 = arith.truncf %23 : vector<2x8x128xf32> to vector<2x8x128xbf16>
    "tpu.trace_start"() <{level = 10 : i32, message = "bnh,bmh->bnm"}> : () -> ()
    %cst_16 = arith.constant dense<0.000000e+00> : vector<2x8x8xf32>
    %25 = tpu.matmul %22, %24, %cst_16 {dimension_numbers = #tpu.dot_dimension_numbers<[2], [2], [1], [1], [0, 0, 0, 1, 1, 1], [0], [0]>} : vector<2x8x128xbf16>, vector<2x8x128xbf16>, vector<2x8x8xf32> -> vector<2x8x8xf32>
    %cst_17 = arith.constant 0.000000e+00 : f32
    "tpu.trace_stop"() : () -> ()
    %26 = vector.broadcast %cst_17 : f32 to vector<2x8x8xf32>
    %27 = arith.cmpf oge, %25, %26 : vector<2x8x8xf32>
    %cst_18 = arith.constant 0.00999999977 : f32
    %28 = vector.broadcast %cst_18 : f32 to vector<2x8x8xf32>
    %29 = arith.mulf %28, %25 : vector<2x8x8xf32>
    %30 = arith.select %27, %25, %29 : vector<2x8x8xi1>, vector<2x8x8xf32>
    %31 = tpu.iota {dimensions = array<i32: 2>} : vector<1x1x8xi32>
    %c8_i32 = arith.constant 8 : i32
    %32 = vector.broadcast %c8_i32 : i32 to vector<1x1x8xi32>
    %33 = arith.cmpi slt, %31, %32 : vector<1x1x8xi32>
    %cst_19 = arith.constant -1.000000e+30 : f32
    %34 = vector.shape_cast %33 : vector<1x1x8xi1> to vector<1x1x8xi1>
    %35 = vector.broadcast %34 : vector<1x1x8xi1> to vector<2x8x8xi1>
    %36 = vector.broadcast %cst_19 : f32 to vector<2x8x8xf32>
    %37 = arith.select %35, %30, %36 : vector<2x8x8xi1>, vector<2x8x8xf32>
    %cst_20 = arith.constant dense<0xFF800000> : vector<2x8xf32>
    %38 = vector.multi_reduction <maximumf>, %37, %cst_20 [2] : vector<2x8x8xf32> to vector<2x8xf32>
    %39 = vector.shape_cast %38 : vector<2x8xf32> to vector<2x8x1xf32>
    %40 = vector.broadcast %39 : vector<2x8x1xf32> to vector<2x8x8xf32>
    %41 = arith.subf %37, %40 : vector<2x8x8xf32>
    %42 = math.exp %41 : vector<2x8x8xf32>
    %cst_21 = arith.constant dense<0.000000e+00> : vector<2x8xf32>
    %43 = vector.multi_reduction <add>, %42, %cst_21 [2] : vector<2x8x8xf32> to vector<2x8xf32>
    %44 = vector.shape_cast %43 : vector<2x8xf32> to vector<2x8x1xf32>
    %45 = vector.broadcast %44 : vector<2x8x1xf32> to vector<2x8x8xf32>
    %46 = arith.divf %42, %45 : vector<2x8x8xf32>
    %47 = arith.truncf %46 : vector<2x8x8xf32> to vector<2x8x8xbf16>
    %48 = vector.shape_cast %7 : vector<16x128xbf16> to vector<2x8x128xbf16>
    "tpu.trace_start"() <{level = 10 : i32, message = "bnm,bmc->bnc"}> : () -> ()
    %cst_22 = arith.constant dense<0.000000e+00> : vector<2x8x128xf32>
    %49 = tpu.matmul %47, %48, %cst_22 {dimension_numbers = #tpu.dot_dimension_numbers<[2], [1], [1], [2], [0, 0, 0, 1, 1, 2], [0], [0]>} : vector<2x8x8xbf16>, vector<2x8x128xbf16>, vector<2x8x128xf32> -> vector<2x8x128xf32>
    "tpu.trace_stop"() : () -> ()
    %50 = vector.shape_cast %49 : vector<2x8x128xf32> to vector<16x128xf32>
    %51 = arith.truncf %50 : vector<16x128xf32> to vector<16x128xbf16>
    %c0_23 = arith.constant 0 : index
    %c0_24 = arith.constant 0 : index
    %c0_25 = arith.constant 0 : index
    %52 = vector.load %arg4[%c0_23, %c0_24, %c0_25] : memref<1x128x256xbf16, #tpu.memory_space<vmem>>, vector<1x128x256xbf16>
    %53 = vector.shape_cast %52 : vector<1x128x256xbf16> to vector<128x256xbf16>
    %cst_26 = arith.constant dense<0.000000e+00> : vector<16x256xf32>
    %54 = tpu.matmul %51, %53, %cst_26 {dimension_numbers = #tpu.dot_dimension_numbers<[1], [0], [0], [1], [0, 0, 1, 1], [], []>} : vector<16x128xbf16>, vector<128x256xbf16>, vector<16x256xf32> -> vector<16x256xf32>
    %c0_27 = arith.constant 0 : index
    %c0_28 = arith.constant 0 : index
    %c0_29 = arith.constant 0 : index
    %55 = vector.load %arg8[%c0_27, %c0_28, %c0_29] : memref<1x1x256xf32, #tpu.memory_space<vmem>>, vector<1x1x256xf32>
    %56 = vector.shape_cast %55 : vector<1x1x256xf32> to vector<1x256xf32>
    %57 = vector.broadcast %56 : vector<1x256xf32> to vector<16x256xf32>
    %58 = arith.addf %54, %57 : vector<16x256xf32>
    %59 = vector.extract_strided_slice %58 {offsets = [0, 0], sizes = [16, 128], strides = [1, 1]} : vector<16x256xf32> to vector<16x128xf32>
    %60 = arith.negf %59 : vector<16x128xf32>
    %61 = math.exp %60 : vector<16x128xf32>
    %cst_30 = arith.constant 1.000000e+00 : f32
    %62 = vector.broadcast %cst_30 : f32 to vector<16x128xf32>
    %63 = arith.addf %62, %61 : vector<16x128xf32>
    %64 = arith.divf %62, %63 : vector<16x128xf32>
    %65 = vector.extract_strided_slice %58 {offsets = [0, 128], sizes = [16, 128], strides = [1, 1]} : vector<16x256xf32> to vector<16x128xf32>
    %66 = arith.negf %65 : vector<16x128xf32>
    %67 = math.exp %66 : vector<16x128xf32>
    %cst_31 = arith.constant 1.000000e+00 : f32
    %68 = vector.broadcast %cst_31 : f32 to vector<16x128xf32>
    %69 = arith.addf %68, %67 : vector<16x128xf32>
    %70 = arith.divf %68, %69 : vector<16x128xf32>
    %71 = arith.mulf %64, %6 : vector<16x128xf32>
    %72 = arith.truncf %71 : vector<16x128xf32> to vector<16x128xbf16>
    %c0_32 = arith.constant 0 : index
    %c0_33 = arith.constant 0 : index
    %c0_34 = arith.constant 0 : index
    %73 = vector.load %arg5[%c0_32, %c0_33, %c0_34] : memref<1x128x128xbf16, #tpu.memory_space<vmem>>, vector<1x128x128xbf16>
    %74 = vector.shape_cast %73 : vector<1x128x128xbf16> to vector<128x128xbf16>
    %cst_35 = arith.constant dense<0.000000e+00> : vector<16x128xf32>
    %75 = tpu.matmul %72, %74, %cst_35 {dimension_numbers = #tpu.dot_dimension_numbers<[1], [0], [0], [1], [0, 0, 1, 1], [], []>} : vector<16x128xbf16>, vector<128x128xbf16>, vector<16x128xf32> -> vector<16x128xf32>
    %76 = arith.addf %13, %75 : vector<16x128xf32>
    %c0_36 = arith.constant 0 : index
    %c0_37 = arith.constant 0 : index
    %c0_38 = arith.constant 0 : index
    %77 = vector.load %arg9[%c0_36, %c0_37, %c0_38] : memref<1x1x128xf32, #tpu.memory_space<vmem>>, vector<1x1x128xf32>
    %78 = vector.shape_cast %77 : vector<1x1x128xf32> to vector<1x128xf32>
    %79 = vector.broadcast %78 : vector<1x128xf32> to vector<16x128xf32>
    %80 = arith.addf %76, %79 : vector<16x128xf32>
    %81 = math.tanh %80 : vector<16x128xf32>
    %82 = arith.mulf %70, %6 : vector<16x128xf32>
    %cst_39 = arith.constant 1.000000e+00 : f32
    %83 = vector.broadcast %cst_39 : f32 to vector<16x128xf32>
    %84 = arith.subf %83, %70 : vector<16x128xf32>
    %85 = arith.mulf %84, %81 : vector<16x128xf32>
    %86 = arith.addf %82, %85 : vector<16x128xf32>
    %87 = arith.truncf %86 : vector<16x128xf32> to vector<16x128xbf16>
    %c0_40 = arith.constant 0 : index
    %c0_41 = arith.constant 0 : index
    %c0_42 = arith.constant 0 : index
    %88 = vector.load %arg6[%c0_40, %c0_41, %c0_42] : memref<1x128x128xbf16, #tpu.memory_space<vmem>>, vector<1x128x128xbf16>
    %89 = vector.shape_cast %88 : vector<1x128x128xbf16> to vector<128x128xbf16>
    %cst_43 = arith.constant dense<0.000000e+00> : vector<16x128xf32>
    %90 = tpu.matmul %87, %89, %cst_43 {dimension_numbers = #tpu.dot_dimension_numbers<[1], [0], [0], [1], [0, 0, 1, 1], [], []>} : vector<16x128xbf16>, vector<128x128xbf16>, vector<16x128xf32> -> vector<16x128xf32>
    %c0_44 = arith.constant 0 : index
    %c0_45 = arith.constant 0 : index
    %c0_46 = arith.constant 0 : index
    %91 = vector.load %arg10[%c0_44, %c0_45, %c0_46] : memref<1x1x128xf32, #tpu.memory_space<vmem>>, vector<1x1x128xf32>
    %92 = vector.shape_cast %91 : vector<1x1x128xf32> to vector<1x128xf32>
    %93 = vector.broadcast %92 : vector<1x128xf32> to vector<16x128xf32>
    %94 = arith.addf %90, %93 : vector<16x128xf32>
    %95 = vector.shape_cast %86 : vector<16x128xf32> to vector<2x8x128xf32>
    %c0_47 = arith.constant 0 : index
    %c0_48 = arith.constant 0 : index
    %c0_49 = arith.constant 0 : index
    %96 = vector.load %arg12[%c0_47, %c0_48, %c0_49] : memref<2x8x128xf32, #tpu.memory_space<vmem>>, vector<2x8x128xf32>
    tpu.vector_store %arg12[%c0_47, %c0_48, %c0_49], %95 {strides = array<i32>} : memref<2x8x128xf32, #tpu.memory_space<vmem>>, vector<2x8x128xf32>,
    %97 = vector.shape_cast %94 : vector<16x128xf32> to vector<2x8x128xf32>
    %c0_50 = arith.constant 0 : index
    %c0_51 = arith.constant 0 : index
    %c0_52 = arith.constant 0 : index
    %98 = vector.load %arg13[%c0_50, %c0_51, %c0_52] : memref<2x8x128xf32, #tpu.memory_space<vmem>>, vector<2x8x128xf32>
    tpu.vector_store %arg13[%c0_50, %c0_51, %c0_52], %97 {strides = array<i32>} : memref<2x8x128xf32, #tpu.memory_space<vmem>>, vector<2x8x128xf32>,
    %99 = vector.shape_cast %94 : vector<16x128xf32> to vector<1x2x8x128xf32>
    %c0_53 = arith.constant 0 : index
    %c0_54 = arith.constant 0 : index
    %c0_55 = arith.constant 0 : index
    %c0_56 = arith.constant 0 : index
    %100 = vector.load %arg11[%c0_53, %c0_54, %c0_55, %c0_56] : memref<1x2x8x128xf32, #tpu.memory_space<vmem>>, vector<1x2x8x128xf32>
    tpu.vector_store %arg11[%c0_53, %c0_54, %c0_55, %c0_56], %99 {strides = array<i32>} : memref<1x2x8x128xf32, #tpu.memory_space<vmem>>, vector<1x2x8x128xf32>,
    return
  }
  func.func @transform_0(%arg0: i32) -> (i32, i32, i32) {
    %c0_i32 = arith.constant 0 : i32
    %c0_i32_0 = arith.constant 0 : i32
    %c0_i32_1 = arith.constant 0 : i32
    %c0_i32_2 = arith.constant 0 : i32
    return %c0_i32, %c0_i32_0, %c0_i32_1 : i32, i32, i32
  }
  func.func @transform_1(%arg0: i32) -> (i32, i32, i32) {
    %c0_i32 = arith.constant 0 : i32
    %c0_i32_0 = arith.constant 0 : i32
    %c0_i32_1 = arith.constant 0 : i32
    return %arg0, %c0_i32, %c0_i32_0 : i32, i32, i32
  }
  func.func @transform_2(%arg0: i32) -> (i32, i32, i32) {
    %c0_i32 = arith.constant 0 : i32
    %c0_i32_0 = arith.constant 0 : i32
    %c0_i32_1 = arith.constant 0 : i32
    return %arg0, %c0_i32, %c0_i32_0 : i32, i32, i32
  }
  func.func @transform_3(%arg0: i32) -> (i32, i32, i32) {
    %c0_i32 = arith.constant 0 : i32
    %c0_i32_0 = arith.constant 0 : i32
    %c0_i32_1 = arith.constant 0 : i32
    return %arg0, %c0_i32, %c0_i32_0 : i32, i32, i32
  }
  func.func @transform_4(%arg0: i32) -> (i32, i32, i32) {
    %c0_i32 = arith.constant 0 : i32
    %c0_i32_0 = arith.constant 0 : i32
    %c0_i32_1 = arith.constant 0 : i32
    return %arg0, %c0_i32, %c0_i32_0 : i32, i32, i32
  }
  func.func @transform_5(%arg0: i32) -> (i32, i32, i32) {
    %c0_i32 = arith.constant 0 : i32
    %c0_i32_0 = arith.constant 0 : i32
    %c0_i32_1 = arith.constant 0 : i32
    return %arg0, %c0_i32, %c0_i32_0 : i32, i32, i32
  }
  func.func @transform_6(%arg0: i32) -> (i32, i32, i32) {
    %c0_i32 = arith.constant 0 : i32
    %c0_i32_0 = arith.constant 0 : i32
    %c0_i32_1 = arith.constant 0 : i32
    return %arg0, %c0_i32, %c0_i32_0 : i32, i32, i32
  }
  func.func @transform_7(%arg0: i32) -> (i32, i32, i32) {
    %c0_i32 = arith.constant 0 : i32
    %c0_i32_0 = arith.constant 0 : i32
    %c0_i32_1 = arith.constant 0 : i32
    return %arg0, %c0_i32, %c0_i32_0 : i32, i32, i32
  }
  func.func @transform_8(%arg0: i32) -> (i32, i32, i32) {
    %c0_i32 = arith.constant 0 : i32
    %c0_i32_0 = arith.constant 0 : i32
    %c0_i32_1 = arith.constant 0 : i32
    return %arg0, %c0_i32, %c0_i32_0 : i32, i32, i32
  }
  func.func @transform_9(%arg0: i32) -> (i32, i32, i32) {
    %c0_i32 = arith.constant 0 : i32
    %c0_i32_0 = arith.constant 0 : i32
    %c0_i32_1 = arith.constant 0 : i32
    return %arg0, %c0_i32, %c0_i32_0 : i32, i32, i32
  }
  func.func @transform_10(%arg0: i32) -> (i32, i32, i32, i32) {
    %c0_i32 = arith.constant 0 : i32
    %c0_i32_0 = arith.constant 0 : i32
    %c0_i32_1 = arith.constant 0 : i32
    %c0_i32_2 = arith.constant 0 : i32
    return %arg0, %c0_i32, %c0_i32_0, %c0_i32_1 : i32, i32, i32, i32
  }
}

</mosaic_0001>

<llo_original>
// kernel: tpu_custom_call.1
$region0: #{tpu_custom_call.1}
  #allocation0 [shape = 'u32[]', space=smem, size = 0x4, offset = 0x4, fixed_abs, tag = 'smem constant byte address 0x4 - core index']
  #allocation1 [shape = 'u32[144,128]{1,0:T(1,128)}', space=vmem, size = 0x12000, scoped, tag = 'internal scratch']
  #allocation2 [shape = 'f32[2,8,128]{2,1,0:T(8,128)}', space=vmem, size = 0x2000, scoped, tag = 'scratch operand']
  #allocation3 [shape = 'f32[2,8,128]{2,1,0:T(8,128)}', space=vmem, size = 0x2000, scoped, tag = 'scratch operand']
  %s0 = inlined_call_operand.hbm [shape: f32[2,8,128], index: 0, kind: input, shape index: {}]
  %s1 = inlined_call_operand.hbm [shape: bf16[4,128,256], index: 1, kind: input, shape index: {}]
  %s2 = inlined_call_operand.hbm [shape: bf16[4,128,128], index: 2, kind: input, shape index: {}]
  %s3 = inlined_call_operand.hbm [shape: bf16[4,128,256], index: 3, kind: input, shape index: {}]
  %s4 = inlined_call_operand.hbm [shape: bf16[4,128,128], index: 4, kind: input, shape index: {}]
  %s5 = inlined_call_operand.hbm [shape: bf16[4,128,128], index: 5, kind: input, shape index: {}]
  %s6 = inlined_call_operand.vmem [shape: f32[4,1,128], index: 6, kind: input, shape index: {}]
  %s7 = inlined_call_operand.vmem [shape: f32[4,1,256], index: 7, kind: input, shape index: {}]
  %s8 = inlined_call_operand.hbm [shape: f32[4,1,128], index: 8, kind: input, shape index: {}]
  %s9 = inlined_call_operand.vmem [shape: f32[4,1,128], index: 9, kind: input, shape index: {}]
  %s10 = inlined_call_operand.hbm [shape: f32[4,2,8,128], index: 10, kind: output, shape index: {}]
  %s11 = sld [smem:[#allocation0]]
  $region105: #{tpu_custom_call.1} parent=0
    _
  %s13 = ssub.s32 1, %s11
  %s14 = scalar_select 0, %s13, %s11
  $region1: #{tpu_custom_call.1} parent=0
    #allocation4 [shape = 'u8[8192]{0}', space=vmem, size = 0x2000, scoped, tag = 'input window, operand 0, single buffered']
    #allocation5 [shape = 's32[2]{0}', space=sflag, size = 0x8, scoped, tag = 'scoped memory for tpu_custom_call.1']
    #allocation6 [shape = 's32[2]{0}', space=sflag, size = 0x8, scoped, tag = 'scoped memory for tpu_custom_call.1']
    #allocation7 [shape = 'u8[131072]{0}', space=vmem, size = 0x20000, scoped, tag = 'input window, operand 1']
    #allocation8 [shape = 's32[2]{0}', space=sflag, size = 0x8, scoped, tag = 'scoped memory for tpu_custom_call.1']
    #allocation9 [shape = 'u8[65536]{0}', space=vmem, size = 0x10000, scoped, tag = 'input window, operand 2']
    #allocation10 [shape = 'u8[131072]{0}', space=vmem, size = 0x20000, scoped, tag = 'input window, operand 3']
    #allocation11 [shape = 's32[2]{0}', space=sflag, size = 0x8, scoped, tag = 'scoped memory for tpu_custom_call.1']
    #allocation12 [shape = 'u8[65536]{0}', space=vmem, size = 0x10000, scoped, tag = 'input window, operand 4']
    #allocation13 [shape = 'u8[65536]{0}', space=vmem, size = 0x10000, scoped, tag = 'input window, operand 5']
    #allocation14 [shape = 's32[2]{0}', space=sflag, size = 0x8, scoped, tag = 'scoped memory for tpu_custom_call.1']
    #allocation15 [shape = 'u8[1024]{0}', space=vmem, size = 0x400, scoped, tag = 'input window, operand 8']
    #allocation16 [shape = 'u8[16384]{0}', space=vmem, size = 0x4000, scoped, tag = 'output window, operand 0']
    %15 = vsyncpa [#allocation5], 0
    %16 = vsyncpa [#allocation8], 0
    %s17 = scalar_lea.sflag [#allocation8], 1
    %18 = vsyncpa %s17, 0
    %19 = vsyncpa [#allocation11], 0
    %s20 = scalar_lea.sflag [#allocation11], 1
    %21 = vsyncpa %s20, 0
    %22 = vsyncpa [#allocation14], 0
    %s23 = scalar_lea.sflag [#allocation14], 1
    %24 = vsyncpa %s23, 0
    %25 = vsyncpa [#allocation6], 0
    %s26 = scalar_lea.sflag [#allocation6], 1
    %27 = vsyncpa %s26, 0
    loop: start=0, step=1, limit=6
    $region2: #{tpu_custom_call.1} parent=1 // loop_pre_header
      _
    $region3: #{tpu_custom_call.1} parent=1 // loop_header
      %s29 = sphi 0, %s33
      %p30 = scmp.ge.s32.totalorder %s29, 6
      %s37 = sphi 0, %s37
      %s39 = sphi 0, %s37
      %s40 = sphi 0, %s39
      %s54 = sphi 0, %s40
      %s60 = sphi 0, %s62
      %s63 = sphi 0, %s60
      %s64 = sphi 0, %s63
      %s80 = sphi 0, %s64
      %s86 = sphi 0, %s88
      %s89 = sphi 0, %s86
      %s90 = sphi 0, %s89
      %s106 = sphi 0, %s90
      %s112 = sphi 0, %s114
      %s115 = sphi 0, %s112
      %s116 = sphi 0, %s115
      %s132 = sphi 0, %s116
      %s138 = sphi 0, %s140
      %s141 = sphi 0, %s138
      %s142 = sphi 0, %s141
      %s158 = sphi 0, %s142
      %s164 = sphi 0, %s166
      %s167 = sphi 0, %s164
      %s168 = sphi 0, %s167
      %s184 = sphi 0, %s168
      %s190 = sphi 0, %s192
      %s193 = sphi 0, %s190
      %s194 = sphi 0, %s193
      %s210 = sphi 0, %s194
      %s216 = sphi 0, %s218
      %s219 = sphi 0, %s216
      %s220 = sphi 0, %s219
      %s236 = sphi 0, %s220
      %s242 = sphi 0, %s244
      %s245 = sphi 0, %s242
      %s246 = sphi 0, %s245
      %s262 = sphi 0, %s246
      %s268 = sphi 0, %s270
      %s271 = sphi 0, %s268
      %s272 = sphi 0, %s271
      %s288 = sphi 0, %s272
      %s294 = sphi 0, %s296
      %s297 = sphi 0, %s294
      %s298 = sphi 0, %s297
      %s314 = sphi 0, %s298
    $region4: #{tpu_custom_call.1} parent=1 // loop_header_branch
      %32 = sbr.rel (%p30) target = $region8
    $region5: #{tpu_custom_call.1} parent=1 // loop_body
      %s34 = ssub.s32 %s29, 1
      %s35 = ssub.s32 %s29, 2
      %s36 = sadd.s32 %s29, 1
      %s38 = sadd.s32 %s37, 1
      %p41 = scmp.eq.s32.totalorder %s29, 3
      %p42 = scmp.ne.s32.totalorder %s37, %s39
      %p43 = scmp.eq.s32.totalorder %s29, 0
      %p44 = por %p42, %p43
      %p45 = scmp.ne.s32.totalorder %s37, %s39
      %p46 = scmp.eq.s32.totalorder %s34, 3
      %p47 = por %p45, %p46
      %p48 = scmp.ne.s32.totalorder %s39, %s40
      %p49 = scmp.eq.s32.totalorder %s34, 0
      %p50 = por %p48, %p49
      %p51 = scmp.ne.s32.totalorder %s39, %s40
      %p52 = scmp.eq.s32.totalorder %s35, 3
      %p53 = por %p51, %p52
      %p55 = scmp.ne.s32.totalorder %s40, %s54
      %p56 = scmp.eq.s32.totalorder %s35, 0
      %p57 = por %p55, %p56
      %s58 = ssub.s32 %s29, %s36
      %p59 = scmp.eq.s32.totalorder %s58, 0
      %s61 = sadd.s32 %s60, 1
      %s62 = scalar_select %p59, %s60, %s61
      %p65 = pneg %p59
      %p66 = scmp.eq.s32.totalorder %s29, 3
      %p67 = por %p65, %p66
      %p68 = scmp.ne.s32.totalorder %s60, %s63
      %p69 = scmp.eq.s32.totalorder %s29, 0
      %p70 = por %p68, %p69
      %p71 = scmp.ne.s32.totalorder %s60, %s63
      %p72 = scmp.eq.s32.totalorder %s34, 3
      %p73 = por %p71, %p72
      %p74 = scmp.ne.s32.totalorder %s63, %s64
      %p75 = scmp.eq.s32.totalorder %s34, 0
      %p76 = por %p74, %p75
      %p77 = scmp.ne.s32.totalorder %s63, %s64
      %p78 = scmp.eq.s32.totalorder %s35, 3
      %p79 = por %p77, %p78
      %p81 = scmp.ne.s32.totalorder %s64, %s80
      %p82 = scmp.eq.s32.totalorder %s35, 0
      %p83 = por %p81, %p82
      %s84 = ssub.s32 %s29, %s36
      %p85 = scmp.eq.s32.totalorder %s84, 0
      %s87 = sadd.s32 %s86, 1
      %s88 = scalar_select %p85, %s86, %s87
      %p91 = pneg %p85
      %p92 = scmp.eq.s32.totalorder %s29, 3
      %p93 = por %p91, %p92
      %p94 = scmp.ne.s32.totalorder %s86, %s89
      %p95 = scmp.eq.s32.totalorder %s29, 0
      %p96 = por %p94, %p95
      %p97 = scmp.ne.s32.totalorder %s86, %s89
      %p98 = scmp.eq.s32.totalorder %s34, 3
      %p99 = por %p97, %p98
      %p100 = scmp.ne.s32.totalorder %s89, %s90
      %p101 = scmp.eq.s32.totalorder %s34, 0
      %p102 = por %p100, %p101
      %p103 = scmp.ne.s32.totalorder %s89, %s90
      %p104 = scmp.eq.s32.totalorder %s35, 3
      %p105 = por %p103, %p104
      %p107 = scmp.ne.s32.totalorder %s90, %s106
      %p108 = scmp.eq.s32.totalorder %s35, 0
      %p109 = por %p107, %p108
      %s110 = ssub.s32 %s29, %s36
      %p111 = scmp.eq.s32.totalorder %s110, 0
      %s113 = sadd.s32 %s112, 1
      %s114 = scalar_select %p111, %s112, %s113
      %p117 = pneg %p111
      %p118 = scmp.eq.s32.totalorder %s29, 3
      %p119 = por %p117, %p118
      %p120 = scmp.ne.s32.totalorder %s112, %s115
      %p121 = scmp.eq.s32.totalorder %s29, 0
      %p122 = por %p120, %p121
      %p123 = scmp.ne.s32.totalorder %s112, %s115
      %p124 = scmp.eq.s32.totalorder %s34, 3
      %p125 = por %p123, %p124
      %p126 = scmp.ne.s32.totalorder %s115, %s116
      %p127 = scmp.eq.s32.totalorder %s34, 0
      %p128 = por %p126, %p127
      %p129 = scmp.ne.s32.totalorder %s115, %s116
      %p130 = scmp.eq.s32.totalorder %s35, 3
      %p131 = por %p129, %p130
      %p133 = scmp.ne.s32.totalorder %s116, %s132
      %p134 = scmp.eq.s32.totalorder %s35, 0
      %p135 = por %p133, %p134
      %s136 = ssub.s32 %s29, %s36
      %p137 = scmp.eq.s32.totalorder %s136, 0
      %s139 = sadd.s32 %s138, 1
      %s140 = scalar_select %p137, %s138, %s139
      %p143 = pneg %p137
      %p144 = scmp.eq.s32.totalorder %s29, 3
      %p145 = por %p143, %p144
      %p146 = scmp.ne.s32.totalorder %s138, %s141
      %p147 = scmp.eq.s32.totalorder %s29, 0
      %p148 = por %p146, %p147
      %p149 = scmp.ne.s32.totalorder %s138, %s141
      %p150 = scmp.eq.s32.totalorder %s34, 3
      %p151 = por %p149, %p150
      %p152 = scmp.ne.s32.totalorder %s141, %s142
      %p153 = scmp.eq.s32.totalorder %s34, 0
      %p154 = por %p152, %p153
      %p155 = scmp.ne.s32.totalorder %s141, %s142
      %p156 = scmp.eq.s32.totalorder %s35, 3
      %p157 = por %p155, %p156
      %p159 = scmp.ne.s32.totalorder %s142, %s158
      %p160 = scmp.eq.s32.totalorder %s35, 0
      %p161 = por %p159, %p160
      %s162 = ssub.s32 %s29, %s36
      %p163 = scmp.eq.s32.totalorder %s162, 0
      %s165 = sadd.s32 %s164, 1
      %s166 = scalar_select %p163, %s164, %s165
      %p169 = pneg %p163
      %p170 = scmp.eq.s32.totalorder %s29, 3
      %p171 = por %p169, %p170
      %p172 = scmp.ne.s32.totalorder %s164, %s167
      %p173 = scmp.eq.s32.totalorder %s29, 0
      %p174 = por %p172, %p173
      %p175 = scmp.ne.s32.totalorder %s164, %s167
      %p176 = scmp.eq.s32.totalorder %s34, 3
      %p177 = por %p175, %p176
      %p178 = scmp.ne.s32.totalorder %s167, %s168
      %p179 = scmp.eq.s32.totalorder %s34, 0
      %p180 = por %p178, %p179
      %p181 = scmp.ne.s32.totalorder %s167, %s168
      %p182 = scmp.eq.s32.totalorder %s35, 3
      %p183 = por %p181, %p182
      %p185 = scmp.ne.s32.totalorder %s168, %s184
      %p186 = scmp.eq.s32.totalorder %s35, 0
      %p187 = por %p185, %p186
      %s188 = ssub.s32 %s29, %s36
      %p189 = scmp.eq.s32.totalorder %s188, 0
      %s191 = sadd.s32 %s190, 1
      %s192 = scalar_select %p189, %s190, %s191
      %p195 = pneg %p189
      %p196 = scmp.eq.s32.totalorder %s29, 3
      %p197 = por %p195, %p196
      %p198 = scmp.ne.s32.totalorder %s190, %s193
      %p199 = scmp.eq.s32.totalorder %s29, 0
      %p200 = por %p198, %p199
      %p201 = scmp.ne.s32.totalorder %s190, %s193
      %p202 = scmp.eq.s32.totalorder %s34, 3
      %p203 = por %p201, %p202
      %p204 = scmp.ne.s32.totalorder %s193, %s194
      %p205 = scmp.eq.s32.totalorder %s34, 0
      %p206 = por %p204, %p205
      %p207 = scmp.ne.s32.totalorder %s193, %s194
      %p208 = scmp.eq.s32.totalorder %s35, 3
      %p209 = por %p207, %p208
      %p211 = scmp.ne.s32.totalorder %s194, %s210
      %p212 = scmp.eq.s32.totalorder %s35, 0
      %p213 = por %p211, %p212
      %s214 = ssub.s32 %s29, %s36
      %p215 = scmp.eq.s32.totalorder %s214, 0
      %s217 = sadd.s32 %s216, 1
      %s218 = scalar_select %p215, %s216, %s217
      %p221 = pneg %p215
      %p222 = scmp.eq.s32.totalorder %s29, 3
      %p223 = por %p221, %p222
      %p224 = scmp.ne.s32.totalorder %s216, %s219
      %p225 = scmp.eq.s32.totalorder %s29, 0
      %p226 = por %p224, %p225
      %p227 = scmp.ne.s32.totalorder %s216, %s219
      %p228 = scmp.eq.s32.totalorder %s34, 3
      %p229 = por %p227, %p228
      %p230 = scmp.ne.s32.totalorder %s219, %s220
      %p231 = scmp.eq.s32.totalorder %s34, 0
      %p232 = por %p230, %p231
      %p233 = scmp.ne.s32.totalorder %s219, %s220
      %p234 = scmp.eq.s32.totalorder %s35, 3
      %p235 = por %p233, %p234
      %p237 = scmp.ne.s32.totalorder %s220, %s236
      %p238 = scmp.eq.s32.totalorder %s35, 0
      %p239 = por %p237, %p238
      %s240 = ssub.s32 %s29, %s36
      %p241 = scmp.eq.s32.totalorder %s240, 0
      %s243 = sadd.s32 %s242, 1
      %s244 = scalar_select %p241, %s242, %s243
      %p247 = pneg %p241
      %p248 = scmp.eq.s32.totalorder %s29, 3
      %p249 = por %p247, %p248
      %p250 = scmp.ne.s32.totalorder %s242, %s245
      %p251 = scmp.eq.s32.totalorder %s29, 0
      %p252 = por %p250, %p251
      %p253 = scmp.ne.s32.totalorder %s242, %s245
      %p254 = scmp.eq.s32.totalorder %s34, 3
      %p255 = por %p253, %p254
      %p256 = scmp.ne.s32.totalorder %s245, %s246
      %p257 = scmp.eq.s32.totalorder %s34, 0
      %p258 = por %p256, %p257
      %p259 = scmp.ne.s32.totalorder %s245, %s246
      %p260 = scmp.eq.s32.totalorder %s35, 3
      %p261 = por %p259, %p260
      %p263 = scmp.ne.s32.totalorder %s246, %s262
      %p264 = scmp.eq.s32.totalorder %s35, 0
      %p265 = por %p263, %p264
      %s266 = ssub.s32 %s29, %s36
      %p267 = scmp.eq.s32.totalorder %s266, 0
      %s269 = sadd.s32 %s268, 1
      %s270 = scalar_select %p267, %s268, %s269
      %p273 = pneg %p267
      %p274 = scmp.eq.s32.totalorder %s29, 3
      %p275 = por %p273, %p274
      %p276 = scmp.ne.s32.totalorder %s268, %s271
      %p277 = scmp.eq.s32.totalorder %s29, 0
      %p278 = por %p276, %p277
      %p279 = scmp.ne.s32.totalorder %s268, %s271
      %p280 = scmp.eq.s32.totalorder %s34, 3
      %p281 = por %p279, %p280
      %p282 = scmp.ne.s32.totalorder %s271, %s272
      %p283 = scmp.eq.s32.totalorder %s34, 0
      %p284 = por %p282, %p283
      %p285 = scmp.ne.s32.totalorder %s271, %s272
      %p286 = scmp.eq.s32.totalorder %s35, 3
      %p287 = por %p285, %p286
      %p289 = scmp.ne.s32.totalorder %s272, %s288
      %p290 = scmp.eq.s32.totalorder %s35, 0
      %p291 = por %p289, %p290
      %s292 = ssub.s32 %s29, %s36
      %p293 = scmp.eq.s32.totalorder %s292, 0
      %s295 = sadd.s32 %s294, 1
      %s296 = scalar_select %p293, %s294, %s295
      %p299 = pneg %p293
      %p300 = scmp.eq.s32.totalorder %s29, 3
      %p301 = por %p299, %p300
      %p302 = scmp.ne.s32.totalorder %s294, %s297
      %p303 = scmp.eq.s32.totalorder %s29, 0
      %p304 = por %p302, %p303
      %p305 = scmp.ne.s32.totalorder %s294, %s297
      %p306 = scmp.eq.s32.totalorder %s34, 3
      %p307 = por %p305, %p306
      %p308 = scmp.ne.s32.totalorder %s297, %s298
      %p309 = scmp.eq.s32.totalorder %s34, 0
      %p310 = por %p308, %p309
      %p311 = scmp.ne.s32.totalorder %s297, %s298
      %p312 = scmp.eq.s32.totalorder %s35, 3
      %p313 = por %p311, %p312
      %p315 = scmp.ne.s32.totalorder %s298, %s314
      %p316 = scmp.eq.s32.totalorder %s35, 0
      %p317 = por %p315, %p316
      %p318 = scmp.le.s32.totalorder 1, %s29
      %p319 = scmp.lt.s32.totalorder %s29, 5
      %p320 = pnand %p318, %p319
      %p321 = pneg %p320
      // Predicated region
      $region9: #{tpu_custom_call.1} parent=5 // pred_check
        _
      $region10: #{tpu_custom_call.1} parent=5 // pred_check_branch
        %323 = sbr.rel (%p320) target = $region12
      $region11: #{tpu_custom_call.1} parent=5 // pred_region
        %s324 = ssub.s32 %s29, 1
        // Predicated region
        $region13: #{tpu_custom_call.1} parent=11 // pred_check
          %p325 = pneg %p50
        $region14: #{tpu_custom_call.1} parent=11 // pred_check_branch
          %327 = sbr.rel (%p325) target = $region16
        $region15: #{tpu_custom_call.1} parent=11 // pred_region
          %s329 = ssub.s32 256, 256
          %330 = vsyncadd [#allocation5], %s329
          %s331 = sshll.u32 [#allocation4], 4
          %s332 = int_to_ptr.vmem [resolvable:$true] %s331
          %337 = dma.hbm_to_vmem [thread:$0]  %s0, 256, %s332, [#allocation5], 128, 128, 8
        $region16: #{tpu_custom_call.1} parent=11 // pred_fallthru
          _
      $region12: #{tpu_custom_call.1} parent=5 // pred_fallthru
        _
      %p338 = scmp.lt.s32.totalorder %s29, 4
      // Predicated region
      $region17: #{tpu_custom_call.1} parent=5 // pred_check
        %p339 = pneg %p338
      $region18: #{tpu_custom_call.1} parent=5 // pred_check_branch
        %341 = sbr.rel (%p339) target = $region20
      $region19: #{tpu_custom_call.1} parent=5 // pred_region
        // Predicated region
        $region21: #{tpu_custom_call.1} parent=19 // pred_check
          %p342 = pneg %p70
        $region22: #{tpu_custom_call.1} parent=19 // pred_check_branch
          %344 = sbr.rel (%p342) target = $region24
        $region23: #{tpu_custom_call.1} parent=19 // pred_region
          %s345 = sand.u32 %s29, 1
          %s346 = scalar_lea.sflag [#allocation8], %s345
          %s347 = sand.u32 %s60, 1
          %s348 = smul.addr %s347, 128
          %s349 = scalar_lea.vmem [#allocation7], %s348
          %s351 = ssub.s32 2048, 2048
          %352 = vsyncadd %s346, %s351
          %s353 = smul.addr %s29, 32
          %s354 = smul.addr %s353, 64
          %s355 = scalar_lea.hbm %s1, %s354
          %s356 = sshll.u32 %s349, 4
          %s357 = int_to_ptr.vmem [resolvable:$true] %s356
          %362 = dma.hbm_to_vmem [thread:$0]  %s355, 2048, %s357, %s346, 128, 128, 8
        $region24: #{tpu_custom_call.1} parent=19 // pred_fallthru
          _
        // Predicated region
        $region25: #{tpu_custom_call.1} parent=19 // pred_check
          %p363 = pneg %p96
        $region26: #{tpu_custom_call.1} parent=19 // pred_check_branch
          %365 = sbr.rel (%p363) target = $region28
        $region27: #{tpu_custom_call.1} parent=19 // pred_region
          %s366 = sand.u32 %s29, 1
          %s367 = scalar_lea.sflag [#allocation8], %s366
          %s368 = sand.u32 %s86, 1
          %s369 = smul.addr %s368, 64
          %s370 = scalar_lea.vmem [#allocation9], %s369
          %s372 = ssub.s32 1024, 1024
          %373 = vsyncadd %s367, %s372
          %s374 = smul.addr %s29, 16
          %s375 = smul.addr %s374, 64
          %s376 = scalar_lea.hbm %s2, %s375
          %s377 = sshll.u32 %s370, 4
          %s378 = int_to_ptr.vmem [resolvable:$true] %s377
          %383 = dma.hbm_to_vmem [thread:$0]  %s376, 1024, %s378, %s367, 64, 64, 4
        $region28: #{tpu_custom_call.1} parent=19 // pred_fallthru
          _
        // Predicated region
        $region29: #{tpu_custom_call.1} parent=19 // pred_check
          %p384 = pneg %p122
        $region30: #{tpu_custom_call.1} parent=19 // pred_check_branch
          %386 = sbr.rel (%p384) target = $region32
        $region31: #{tpu_custom_call.1} parent=19 // pred_region
          %s387 = sand.u32 %s29, 1
          %s388 = scalar_lea.sflag [#allocation11], %s387
          %s389 = sand.u32 %s112, 1
          %s390 = smul.addr %s389, 128
          %s391 = scalar_lea.vmem [#allocation10], %s390
          %s393 = ssub.s32 2048, 2048
          %394 = vsyncadd %s388, %s393
          %s395 = smul.addr %s29, 32
          %s396 = smul.addr %s395, 64
          %s397 = scalar_lea.hbm %s3, %s396
          %s398 = sshll.u32 %s391, 4
          %s399 = int_to_ptr.vmem [resolvable:$true] %s398
          %404 = dma.hbm_to_vmem [thread:$0]  %s397, 2048, %s399, %s388, 128, 128, 8
        $region32: #{tpu_custom_call.1} parent=19 // pred_fallthru
          _
        // Predicated region
        $region33: #{tpu_custom_call.1} parent=19 // pred_check
          %p405 = pneg %p148
        $region34: #{tpu_custom_call.1} parent=19 // pred_check_branch
          %407 = sbr.rel (%p405) target = $region36
        $region35: #{tpu_custom_call.1} parent=19 // pred_region
          %s408 = sand.u32 %s29, 1
          %s409 = scalar_lea.sflag [#allocation11], %s408
          %s410 = sand.u32 %s138, 1
          %s411 = smul.addr %s410, 64
          %s412 = scalar_lea.vmem [#allocation12], %s411
          %s414 = ssub.s32 1024, 1024
          %415 = vsyncadd %s409, %s414
          %s416 = smul.addr %s29, 16
          %s417 = smul.addr %s416, 64
          %s418 = scalar_lea.hbm %s4, %s417
          %s419 = sshll.u32 %s412, 4
          %s420 = int_to_ptr.vmem [resolvable:$true] %s419
          %425 = dma.hbm_to_vmem [thread:$0]  %s418, 1024, %s420, %s409, 64, 64, 4
        $region36: #{tpu_custom_call.1} parent=19 // pred_fallthru
          _
        // Predicated region
        $region37: #{tpu_custom_call.1} parent=19 // pred_check
          %p426 = pneg %p174
        $region38: #{tpu_custom_call.1} parent=19 // pred_check_branch
          %428 = sbr.rel (%p426) target = $region40
        $region39: #{tpu_custom_call.1} parent=19 // pred_region
          %s429 = sand.u32 %s29, 1
          %s430 = scalar_lea.sflag [#allocation14], %s429
          %s431 = sand.u32 %s164, 1
          %s432 = smul.addr %s431, 64
          %s433 = scalar_lea.vmem [#allocation13], %s432
          %s435 = ssub.s32 1024, 1024
          %436 = vsyncadd %s430, %s435
          %s437 = smul.addr %s29, 16
          %s438 = smul.addr %s437, 64
          %s439 = scalar_lea.hbm %s5, %s438
          %s440 = sshll.u32 %s433, 4
          %s441 = int_to_ptr.vmem [resolvable:$true] %s440
          %446 = dma.hbm_to_vmem [thread:$0]  %s439, 1024, %s441, %s430, 64, 64, 4
        $region40: #{tpu_custom_call.1} parent=19 // pred_fallthru
          _
        // Predicated region
        $region41: #{tpu_custom_call.1} parent=19 // pred_check
          %p447 = pneg %p200
        $region42: #{tpu_custom_call.1} parent=19 // pred_check_branch
          %449 = sbr.rel (%p447) target = $region44
        $region43: #{tpu_custom_call.1} parent=19 // pred_region
          %p450 = scmp.lt.s32.totalorder %s29, 3
          %s451 = scalar_select %p450, %s29, 3
          %s452 = scalar_lea.vmem %s6, %s451
        $region44: #{tpu_custom_call.1} parent=19 // pred_fallthru
          _
        // Predicated region
        $region45: #{tpu_custom_call.1} parent=19 // pred_check
          %p453 = pneg %p226
        $region46: #{tpu_custom_call.1} parent=19 // pred_check_branch
          %455 = sbr.rel (%p453) target = $region48
        $region47: #{tpu_custom_call.1} parent=19 // pred_region
          %p456 = scmp.lt.s32.totalorder %s29, 3
          %s457 = scalar_select %p456, %s29, 3
          %s458 = smul.addr %s457, 2
          %s459 = scalar_lea.vmem %s7, %s458
        $region48: #{tpu_custom_call.1} parent=19 // pred_fallthru
          _
        // Predicated region
        $region49: #{tpu_custom_call.1} parent=19 // pred_check
          %p460 = pneg %p252
        $region50: #{tpu_custom_call.1} parent=19 // pred_check_branch
          %462 = sbr.rel (%p460) target = $region52
        $region51: #{tpu_custom_call.1} parent=19 // pred_region
          %s463 = sand.u32 %s29, 1
          %s464 = scalar_lea.sflag [#allocation14], %s463
          %s465 = sand.u32 %s242, 1
          %s466 = scalar_lea.vmem [#allocation15], %s465
          %s468 = ssub.s32 16, 16
          %469 = vsyncadd %s464, %s468
          %s470 = smul.addr %s29, 16
          %s471 = scalar_lea.hbm %s8, %s470
          %s473 = sshll.u32 %s466, 4
          %s474 = int_to_ptr.vmem [resolvable:$true] %s473
          %476 = dma.hbm_to_vmem [thread:$0]  %s471, 16, %s474, %s464
        $region52: #{tpu_custom_call.1} parent=19 // pred_fallthru
          _
        // Predicated region
        $region53: #{tpu_custom_call.1} parent=19 // pred_check
          %p477 = pneg %p278
        $region54: #{tpu_custom_call.1} parent=19 // pred_check_branch
          %479 = sbr.rel (%p477) target = $region56
        $region55: #{tpu_custom_call.1} parent=19 // pred_region
          %p480 = scmp.lt.s32.totalorder %s29, 3
          %s481 = scalar_select %p480, %s29, 3
          %s482 = scalar_lea.vmem %s9, %s481
        $region56: #{tpu_custom_call.1} parent=19 // pred_fallthru
          _
      $region20: #{tpu_custom_call.1} parent=5 // pred_fallthru
        _
      %p483 = scmp.le.s32.totalorder 1, %s29
      %p484 = scmp.lt.s32.totalorder %s29, 5
      %p485 = pnand %p483, %p484
      %p486 = pneg %p485
      // Predicated region
      $region57: #{tpu_custom_call.1} parent=5 // pred_check
        _
      $region58: #{tpu_custom_call.1} parent=5 // pred_check_branch
        %488 = sbr.rel (%p485) target = $region60
      $region59: #{tpu_custom_call.1} parent=5 // pred_region
        %s489 = ssub.s32 %s29, 1
        // Predicated region
        $region61: #{tpu_custom_call.1} parent=59 // pred_check
          %p490 = pneg %p50
        $region62: #{tpu_custom_call.1} parent=59 // pred_check_branch
          %492 = sbr.rel (%p490) target = $region64
        $region63: #{tpu_custom_call.1} parent=59 // pred_region
          %493 = dma.done [#allocation5], 256
        $region64: #{tpu_custom_call.1} parent=59 // pred_fallthru
          _
        %s494 = sand.u32 %s34, 1
        %s495 = scalar_lea.sflag [#allocation8], %s494
        %s496 = sand.u32 %s63, 1
        %s497 = smul.addr %s496, 128
        %s498 = scalar_lea.vmem [#allocation7], %s497
        // Predicated region
        $region65: #{tpu_custom_call.1} parent=59 // pred_check
          %p499 = pneg %p76
        $region66: #{tpu_custom_call.1} parent=59 // pred_check_branch
          %501 = sbr.rel (%p499) target = $region68
        $region67: #{tpu_custom_call.1} parent=59 // pred_region
          %502 = dma.done %s495, 2048
        $region68: #{tpu_custom_call.1} parent=59 // pred_fallthru
          _
        %s503 = sand.u32 %s34, 1
        %s504 = scalar_lea.sflag [#allocation8], %s503
        %s505 = sand.u32 %s89, 1
        %s506 = smul.addr %s505, 64
        %s507 = scalar_lea.vmem [#allocation9], %s506
        // Predicated region
        $region69: #{tpu_custom_call.1} parent=59 // pred_check
          %p508 = pneg %p102
        $region70: #{tpu_custom_call.1} parent=59 // pred_check_branch
          %510 = sbr.rel (%p508) target = $region72
        $region71: #{tpu_custom_call.1} parent=59 // pred_region
          %511 = dma.done %s504, 1024
        $region72: #{tpu_custom_call.1} parent=59 // pred_fallthru
          _
        %s512 = sand.u32 %s34, 1
        %s513 = scalar_lea.sflag [#allocation11], %s512
        %s514 = sand.u32 %s115, 1
        %s515 = smul.addr %s514, 128
        %s516 = scalar_lea.vmem [#allocation10], %s515
        // Predicated region
        $region73: #{tpu_custom_call.1} parent=59 // pred_check
          %p517 = pneg %p128
        $region74: #{tpu_custom_call.1} parent=59 // pred_check_branch
          %519 = sbr.rel (%p517) target = $region76
        $region75: #{tpu_custom_call.1} parent=59 // pred_region
          %520 = dma.done %s513, 2048
        $region76: #{tpu_custom_call.1} parent=59 // pred_fallthru
          _
        %s521 = sand.u32 %s34, 1
        %s522 = scalar_lea.sflag [#allocation11], %s521
        %s523 = sand.u32 %s141, 1
        %s524 = smul.addr %s523, 64
        %s525 = scalar_lea.vmem [#allocation12], %s524
        // Predicated region
        $region77: #{tpu_custom_call.1} parent=59 // pred_check
          %p526 = pneg %p154
        $region78: #{tpu_custom_call.1} parent=59 // pred_check_branch
          %528 = sbr.rel (%p526) target = $region80
        $region79: #{tpu_custom_call.1} parent=59 // pred_region
          %529 = dma.done %s522, 1024
        $region80: #{tpu_custom_call.1} parent=59 // pred_fallthru
          _
        %s530 = sand.u32 %s34, 1
        %s531 = scalar_lea.sflag [#allocation14], %s530
        %s532 = sand.u32 %s167, 1
        %s533 = smul.addr %s532, 64
        %s534 = scalar_lea.vmem [#allocation13], %s533
        // Predicated region
        $region81: #{tpu_custom_call.1} parent=59 // pred_check
          %p535 = pneg %p180
        $region82: #{tpu_custom_call.1} parent=59 // pred_check_branch
          %537 = sbr.rel (%p535) target = $region84
        $region83: #{tpu_custom_call.1} parent=59 // pred_region
          %538 = dma.done %s531, 1024
        $region84: #{tpu_custom_call.1} parent=59 // pred_fallthru
          _
        %s539 = sand.u32 %s34, 1
        %s540 = scalar_lea.sflag [#allocation14], %s539
        %s541 = sand.u32 %s245, 1
        %s542 = scalar_lea.vmem [#allocation15], %s541
        // Predicated region
        $region85: #{tpu_custom_call.1} parent=59 // pred_check
          %p543 = pneg %p258
        $region86: #{tpu_custom_call.1} parent=59 // pred_check_branch
          %545 = sbr.rel (%p543) target = $region88
        $region87: #{tpu_custom_call.1} parent=59 // pred_region
          %546 = dma.done %s540, 16
        $region88: #{tpu_custom_call.1} parent=59 // pred_fallthru
          _
        %p547 = pneg %p50
        %p548 = pneg %p47
        %s549 = sand.u32 %s34, 1
        %s550 = scalar_lea.sflag [#allocation8], %s549
        %s551 = sand.u32 %s63, 1
        %s552 = smul.addr %s551, 128
        %s553 = scalar_lea.vmem [#allocation7], %s552
        %p554 = pneg %p76
        %p555 = pneg %p73
        %s556 = sand.u32 %s34, 1
        %s557 = scalar_lea.sflag [#allocation8], %s556
        %s558 = sand.u32 %s89, 1
        %s559 = smul.addr %s558, 64
        %s560 = scalar_lea.vmem [#allocation9], %s559
        %p561 = pneg %p102
        %p562 = pneg %p99
        %s563 = sand.u32 %s34, 1
        %s564 = scalar_lea.sflag [#allocation11], %s563
        %s565 = sand.u32 %s115, 1
        %s566 = smul.addr %s565, 128
        %s567 = scalar_lea.vmem [#allocation10], %s566
        %p568 = pneg %p128
        %p569 = pneg %p125
        %s570 = sand.u32 %s34, 1
        %s571 = scalar_lea.sflag [#allocation11], %s570
        %s572 = sand.u32 %s141, 1
        %s573 = smul.addr %s572, 64
        %s574 = scalar_lea.vmem [#allocation12], %s573
        %p575 = pneg %p154
        %p576 = pneg %p151
        %s577 = sand.u32 %s34, 1
        %s578 = scalar_lea.sflag [#allocation14], %s577
        %s579 = sand.u32 %s167, 1
        %s580 = smul.addr %s579, 64
        %s581 = scalar_lea.vmem [#allocation13], %s580
        %p582 = pneg %p180
        %p583 = pneg %p177
        %p584 = scmp.lt.s32.totalorder %s34, 3
        %s585 = scalar_select %p584, %s34, 3
        %s586 = scalar_lea.vmem %s6, %s585
        %p587 = pneg %p206
        %p588 = pneg %p203
        %p589 = scmp.lt.s32.totalorder %s34, 3
        %s590 = scalar_select %p589, %s34, 3
        %s591 = smul.addr %s590, 2
        %s592 = scalar_lea.vmem %s7, %s591
        %p593 = pneg %p232
        %p594 = pneg %p229
        %s595 = sand.u32 %s34, 1
        %s596 = scalar_lea.sflag [#allocation14], %s595
        %s597 = sand.u32 %s245, 1
        %s598 = scalar_lea.vmem [#allocation15], %s597
        %p599 = pneg %p258
        %p600 = pneg %p255
        %p601 = scmp.lt.s32.totalorder %s34, 3
        %s602 = scalar_select %p601, %s34, 3
        %s603 = scalar_lea.vmem %s9, %s602
        %p604 = pneg %p284
        %p605 = pneg %p281
        %p606 = pneg %p310
        %p607 = pneg %p307
        %s608 = sand.u32 %s297, 1
        %s609 = scalar_lea.sflag [#allocation6], %s608
        %s610 = sand.u32 %s297, 1
        %s611 = smul.addr %s610, 16
        %s612 = scalar_lea.vmem [#allocation16], %s611
        %p613 = scmp.lt.s32.totalorder %s34, 3
        %s614 = scalar_select %p613, %s34, 3
        %s615 = scalar_lea.vmem %s6, %s614
        %p616 = scmp.lt.s32.totalorder %s34, 3
        %s617 = scalar_select %p616, %s34, 3
        %s618 = smul.addr %s617, 2
        %s619 = scalar_lea.vmem %s7, %s618
        %p620 = scmp.lt.s32.totalorder %s34, 3
        %s621 = scalar_select %p620, %s34, 3
        %s622 = scalar_lea.vmem %s9, %s621
        %p624 = scmp.eq.s32.totalorder %s34, 0
        // Predicated region
        $region89: #{tpu_custom_call.1} parent=59 // pred_check
          %p625 = pneg %p624
        $region90: #{tpu_custom_call.1} parent=59 // pred_check_branch
          %627 = sbr.rel (%p625) target = $region92
        $region91: #{tpu_custom_call.1} parent=59 // pred_region
          %v628 = vld [vmem:[#allocation4] sm:$0xff]
          %v629 = vld [vmem:[#allocation4 + $0x8] sm:$0xff]
          %630 = vst [vmem:[#allocation2] sm:$0xff] %v628
          %631 = vst [vmem:[#allocation2 + $0x8] sm:$0xff] %v629
          %632 = vst [vmem:[#allocation3] sm:$0xff] 0.0
          %633 = vst [vmem:[#allocation3 + $0x8] sm:$0xff] 0.0
        $region92: #{tpu_custom_call.1} parent=59 // pred_fallthru
          _
        %v634 = vld [vmem:[#allocation3] sm:$0xff]
        %v635 = vld [vmem:[#allocation3 + $0x8] sm:$0xff]
        %v636 = vld [vmem:[#allocation2] sm:$0xff]
        %v637 = vld [vmem:[#allocation2 + $0x8] sm:$0xff]
        %v638 = vpack.c.bf16 %v635, %v634
        %v639 = vpack.c.bf16 %v637, %v636
        %v640 = vld [vmem:[%s498] sm:$0xff]
        %v641 = vld [vmem:[%s498 + $0x8] sm:$0xff]
        %v642 = vld [vmem:[%s498 + $0x10] sm:$0xff]
        %v643 = vld [vmem:[%s498 + $0x18] sm:$0xff]
        %v644 = vld [vmem:[%s498 + $0x20] sm:$0xff]
        %v645 = vld [vmem:[%s498 + $0x28] sm:$0xff]
        %v646 = vld [vmem:[%s498 + $0x30] sm:$0xff]
        %v647 = vld [vmem:[%s498 + $0x38] sm:$0xff]
        %v648 = vld [vmem:[%s498 + $0x40] sm:$0xff]
        %v649 = vld [vmem:[%s498 + $0x48] sm:$0xff]
        %v650 = vld [vmem:[%s498 + $0x50] sm:$0xff]
        %v651 = vld [vmem:[%s498 + $0x58] sm:$0xff]
        %v652 = vld [vmem:[%s498 + $0x60] sm:$0xff]
        %v653 = vld [vmem:[%s498 + $0x68] sm:$0xff]
        %v654 = vld [vmem:[%s498 + $0x70] sm:$0xff]
        %v655 = vld [vmem:[%s498 + $0x78] sm:$0xff]
        %v672 = vunpack.c.l.b16 %v640
        %v673 = vunpack.c.h.b16 %v640
        %v674 = vunpack.c.l.b16 %v641
        %v675 = vunpack.c.h.b16 %v641
        %v676 = vunpack.c.l.b16 %v642
        %v677 = vunpack.c.h.b16 %v642
        %v678 = vunpack.c.l.b16 %v643
        %v679 = vunpack.c.h.b16 %v643
        %v680 = vunpack.c.l.b16 %v644
        %v681 = vunpack.c.h.b16 %v644
        %v682 = vunpack.c.l.b16 %v645
        %v683 = vunpack.c.h.b16 %v645
        %v684 = vunpack.c.l.b16 %v646
        %v685 = vunpack.c.h.b16 %v646
        %v686 = vunpack.c.l.b16 %v647
        %v687 = vunpack.c.h.b16 %v647
        %v688 = vunpack.c.l.b16 %v648
        %v689 = vunpack.c.h.b16 %v648
        %v690 = vunpack.c.l.b16 %v649
        %v691 = vunpack.c.h.b16 %v649
        %v692 = vunpack.c.l.b16 %v650
        %v693 = vunpack.c.h.b16 %v650
        %v694 = vunpack.c.l.b16 %v651
        %v695 = vunpack.c.h.b16 %v651
        %v696 = vunpack.c.l.b16 %v652
        %v697 = vunpack.c.h.b16 %v652
        %v698 = vunpack.c.l.b16 %v653
        %v699 = vunpack.c.h.b16 %v653
        %v700 = vunpack.c.l.b16 %v654
        %v701 = vunpack.c.h.b16 %v654
        %v702 = vunpack.c.l.b16 %v655
        %v703 = vunpack.c.h.b16 %v655
        %v704 = vpack.c.b16 %v674, %v672
        %v705 = vpack.c.b16 %v675, %v673
        %v706 = vpack.c.b16 %v678, %v676
        %v707 = vpack.c.b16 %v679, %v677
        %v708 = vpack.c.b16 %v682, %v680
        %v709 = vpack.c.b16 %v683, %v681
        %v710 = vpack.c.b16 %v686, %v684
        %v711 = vpack.c.b16 %v687, %v685
        %v712 = vpack.c.b16 %v690, %v688
        %v713 = vpack.c.b16 %v691, %v689
        %v714 = vpack.c.b16 %v694, %v692
        %v715 = vpack.c.b16 %v695, %v693
        %v716 = vpack.c.b16 %v698, %v696
        %v717 = vpack.c.b16 %v699, %v697
        %v718 = vpack.c.b16 %v702, %v700
        %v719 = vpack.c.b16 %v703, %v701
        %736 = vmatprep.subr.bf16.mxu0 %v719
        %737 = vmatpush1.bf16.msra.mxu0 %v718
        %738 = vmatprep.subr.bf16.mxu0 %v717
        %739 = vmatpush1.bf16.msra.mxu0 %v716
        %740 = vmatprep.subr.bf16.mxu0 %v715
        %741 = vmatpush1.bf16.msra.mxu0 %v714
        %742 = vmatprep.subr.bf16.mxu0 %v713
        %743 = vmatpush1.bf16.msra.mxu0 %v712
        %744 = vmatprep.subr.bf16.mxu0 %v711
        %745 = vmatpush1.bf16.msra.mxu0 %v710
        %746 = vmatprep.subr.bf16.mxu0 %v709
        %747 = vmatpush1.bf16.msra.mxu0 %v708
        %748 = vmatprep.subr.bf16.mxu0 %v707
        %749 = vmatpush1.bf16.msra.mxu0 %v706
        %750 = vmatprep.subr.bf16.mxu0 %v705
        %751 = vmatpush1.bf16.msra.mxu0 %v704
        %752 = vmatprep.subr.bf16.mxu0 0
        %753 = vmatpush2.bf16.msra.mxu0 0
        %754 = vmatprep.subr.bf16.mxu0 0
        %755 = vmatpush2.bf16.msra.mxu0 0
        %756 = vmatprep.subr.bf16.mxu0 0
        %757 = vmatpush2.bf16.msra.mxu0 0
        %758 = vmatprep.subr.bf16.mxu0 0
        %759 = vmatpush2.bf16.msra.mxu0 0
        %760 = vmatprep.subr.bf16.mxu0 0
        %761 = vmatpush2.bf16.msra.mxu0 0
        %762 = vmatprep.subr.bf16.mxu0 0
        %763 = vmatpush2.bf16.msra.mxu0 0
        %764 = vmatprep.subr.bf16.mxu0 0
        %765 = vmatpush2.bf16.msra.mxu0 0
        %766 = vmatprep.subr.bf16.mxu0 0
        %767 = vmatpush2.bf16.msra.mxu0 0
        %768 = vmatprep.mubr.bf16.mxu0 0
        %769 = vmatmul.mubr.bf16.gmra.mxu0 %v638
        %v770 = vpop.f32.mrf.mxu0
        %v771 = vadd.f32 0.0, %v770
        %v772 = vpop.f32.mrf.mxu0
        %v773 = vadd.f32 0.0, %v772
        %v774 = vpop.f32.mrf.mxu0
        %v775 = vadd.f32 0.0, %v774
        %v776 = vpop.f32.mrf.mxu0
        %v777 = vadd.f32 0.0, %v776
        %778 = vdwg.mxu0
        %v779 = vld [vmem:[%s507] sm:$0xf]
        %v780 = vld [vmem:[%s507 + $0x4] sm:$0xf]
        %v781 = vld [vmem:[%s507 + $0x8] sm:$0xf]
        %v782 = vld [vmem:[%s507 + $0xc] sm:$0xf]
        %v783 = vld [vmem:[%s507 + $0x10] sm:$0xf]
        %v784 = vld [vmem:[%s507 + $0x14] sm:$0xf]
        %v785 = vld [vmem:[%s507 + $0x18] sm:$0xf]
        %v786 = vld [vmem:[%s507 + $0x1c] sm:$0xf]
        %v787 = vld [vmem:[%s507 + $0x20] sm:$0xf]
        %v788 = vld [vmem:[%s507 + $0x24] sm:$0xf]
        %v789 = vld [vmem:[%s507 + $0x28] sm:$0xf]
        %v790 = vld [vmem:[%s507 + $0x2c] sm:$0xf]
        %v791 = vld [vmem:[%s507 + $0x30] sm:$0xf]
        %v792 = vld [vmem:[%s507 + $0x34] sm:$0xf]
        %v793 = vld [vmem:[%s507 + $0x38] sm:$0xf]
        %v794 = vld [vmem:[%s507 + $0x3c] sm:$0xf]
        %v795 = vld [vmem:[%s615] sm:$0x1]
        %v797 = vlaneseq
        %v798 = vshrl.u32 %v797, 7
        %v799 = vsub.s32 0, %v798
        %v800 = vrot.slane %v795, %v799
        %v818 = vunpack.c.l.b16 %v779
        %v819 = vunpack.c.l.b16 %v780
        %v820 = vunpack.c.l.b16 %v781
        %v821 = vunpack.c.l.b16 %v782
        %v822 = vunpack.c.l.b16 %v783
        %v823 = vunpack.c.l.b16 %v784
        %v824 = vunpack.c.l.b16 %v785
        %v825 = vunpack.c.l.b16 %v786
        %v826 = vunpack.c.l.b16 %v787
        %v827 = vunpack.c.l.b16 %v788
        %v828 = vunpack.c.l.b16 %v789
        %v829 = vunpack.c.l.b16 %v790
        %v830 = vunpack.c.l.b16 %v791
        %v831 = vunpack.c.l.b16 %v792
        %v832 = vunpack.c.l.b16 %v793
        %v833 = vunpack.c.l.b16 %v794
        %v834 = vpack.c.b16 %v819, %v818
        %v835 = vpack.c.b16 %v821, %v820
        %v836 = vpack.c.b16 %v823, %v822
        %v837 = vpack.c.b16 %v825, %v824
        %v838 = vpack.c.b16 %v827, %v826
        %v839 = vpack.c.b16 %v829, %v828
        %v840 = vpack.c.b16 %v831, %v830
        %v841 = vpack.c.b16 %v833, %v832
        %850 = vmatprep.subr.bf16.mxu0 0
        %851 = vmatpush1.bf16.msra.mxu0 %v841
        %852 = vmatprep.subr.bf16.mxu0 0
        %853 = vmatpush1.bf16.msra.mxu0 %v840
        %854 = vmatprep.subr.bf16.mxu0 0
        %855 = vmatpush1.bf16.msra.mxu0 %v839
        %856 = vmatprep.subr.bf16.mxu0 0
        %857 = vmatpush1.bf16.msra.mxu0 %v838
        %858 = vmatprep.subr.bf16.mxu0 0
        %859 = vmatpush1.bf16.msra.mxu0 %v837
        %860 = vmatprep.subr.bf16.mxu0 0
        %861 = vmatpush1.bf16.msra.mxu0 %v836
        %862 = vmatprep.subr.bf16.mxu0 0
        %863 = vmatpush1.bf16.msra.mxu0 %v835
        %864 = vmatprep.subr.bf16.mxu0 0
        %865 = vmatpush1.bf16.msra.mxu0 %v834
        %866 = vmatprep.subr.bf16.mxu0 0
        %867 = vmatpush2.bf16.msra.mxu0 0
        %868 = vmatprep.subr.bf16.mxu0 0
        %869 = vmatpush2.bf16.msra.mxu0 0
        %870 = vmatprep.subr.bf16.mxu0 0
        %871 = vmatpush2.bf16.msra.mxu0 0
        %872 = vmatprep.subr.bf16.mxu0 0
        %873 = vmatpush2.bf16.msra.mxu0 0
        %874 = vmatprep.subr.bf16.mxu0 0
        %875 = vmatpush2.bf16.msra.mxu0 0
        %876 = vmatprep.subr.bf16.mxu0 0
        %877 = vmatpush2.bf16.msra.mxu0 0
        %878 = vmatprep.subr.bf16.mxu0 0
        %879 = vmatpush2.bf16.msra.mxu0 0
        %880 = vmatprep.subr.bf16.mxu0 0
        %881 = vmatpush2.bf16.msra.mxu0 0
        %882 = vmatprep.mubr.bf16.mxu0 0
        %883 = vmatmul.mubr.bf16.gmra.mxu0 %v639
        %v884 = vpop.f32.mrf.mxu0
        %v885 = vadd.f32 %v800, %v884
        %v886 = vpop.f32.mrf.mxu0
        %v887 = vpop.f32.mrf.mxu0
        %v888 = vadd.f32 %v800, %v887
        %v889 = vpop.f32.mrf.mxu0
        %890 = vdwg.mxu0
        %v891 = vpack.c.bf16 %v771, %v771
        %v892 = vpack.c.bf16 %v775, %v775
        %v893 = vpack.c.bf16 %v885, %v885
        %v894 = vpack.c.bf16 %v888, %v888
        %895 = vmatprep.subr.bf16.mxu0 0
        %896 = vmatpush1.bf16.xpose.msra.mxu0 0
        %897 = vmatprep.subr.bf16.mxu0 0
        %898 = vmatpush1.bf16.xpose.msra.mxu0 0
        %899 = vmatprep.subr.bf16.mxu0 0
        %900 = vmatpush1.bf16.xpose.msra.mxu0 0
        %901 = vmatprep.subr.bf16.mxu0 0
        %902 = vmatpush1.bf16.xpose.msra.mxu0 0
        %903 = vmatprep.subr.bf16.mxu0 0
        %904 = vmatpush1.bf16.xpose.msra.mxu0 0
        %905 = vmatprep.subr.bf16.mxu0 0
        %906 = vmatpush1.bf16.xpose.msra.mxu0 0
        %907 = vmatprep.subr.bf16.mxu0 0
        %908 = vmatpush1.bf16.xpose.msra.mxu0 0
        %909 = vmatprep.subr.bf16.mxu0 0
        %910 = vmatpush1.bf16.xpose.msra.mxu0 %v893
        %911 = vmatprep.subr.bf16.mxu0 0
        %912 = vmatpush2.bf16.xpose.msra.mxu0 0
        %913 = vmatprep.subr.bf16.mxu0 0
        %914 = vmatpush2.bf16.xpose.msra.mxu0 0
        %915 = vmatprep.subr.bf16.mxu0 0
        %916 = vmatpush2.bf16.xpose.msra.mxu0 0
        %917 = vmatprep.subr.bf16.mxu0 0
        %918 = vmatpush2.bf16.xpose.msra.mxu0 0
        %919 = vmatprep.subr.bf16.mxu0 0
        %920 = vmatpush2.bf16.xpose.msra.mxu0 0
        %921 = vmatprep.subr.bf16.mxu0 0
        %922 = vmatpush2.bf16.xpose.msra.mxu0 0
        %923 = vmatprep.subr.bf16.mxu0 0
        %924 = vmatpush2.bf16.xpose.msra.mxu0 0
        %925 = vmatprep.subr.bf16.mxu0 0
        %926 = vmatpush2.bf16.xpose.msra.mxu0 0
        %927 = vmatprep.mubr.bf16.mxu0 0
        %928 = vmatmul.mubr.bf16.gmra.mxu0 %v891
        %v929 = vpop.f32.mrf.mxu0
        %v930 = vadd.f32 0.0, %v929
        %v931 = vpop.f32.mrf.mxu0
        %v932 = vpop.f32.mrf.mxu0
        %v933 = vpop.f32.mrf.mxu0
        %934 = vdwg.mxu0
        %935 = vmatprep.subr.bf16.mxu0 0
        %936 = vmatpush1.bf16.xpose.msra.mxu0 0
        %937 = vmatprep.subr.bf16.mxu0 0
        %938 = vmatpush1.bf16.xpose.msra.mxu0 0
        %939 = vmatprep.subr.bf16.mxu0 0
        %940 = vmatpush1.bf16.xpose.msra.mxu0 0
        %941 = vmatprep.subr.bf16.mxu0 0
        %942 = vmatpush1.bf16.xpose.msra.mxu0 0
        %943 = vmatprep.subr.bf16.mxu0 0
        %944 = vmatpush1.bf16.xpose.msra.mxu0 0
        %945 = vmatprep.subr.bf16.mxu0 0
        %946 = vmatpush1.bf16.xpose.msra.mxu0 0
        %947 = vmatprep.subr.bf16.mxu0 0
        %948 = vmatpush1.bf16.xpose.msra.mxu0 0
        %949 = vmatprep.subr.bf16.mxu0 0
        %950 = vmatpush1.bf16.xpose.msra.mxu0 %v894
        %951 = vmatprep.subr.bf16.mxu0 0
        %952 = vmatpush2.bf16.xpose.msra.mxu0 0
        %953 = vmatprep.subr.bf16.mxu0 0
        %954 = vmatpush2.bf16.xpose.msra.mxu0 0
        %955 = vmatprep.subr.bf16.mxu0 0
        %956 = vmatpush2.bf16.xpose.msra.mxu0 0
        %957 = vmatprep.subr.bf16.mxu0 0
        %958 = vmatpush2.bf16.xpose.msra.mxu0 0
        %959 = vmatprep.subr.bf16.mxu0 0
        %960 = vmatpush2.bf16.xpose.msra.mxu0 0
        %961 = vmatprep.subr.bf16.mxu0 0
        %962 = vmatpush2.bf16.xpose.msra.mxu0 0
        %963 = vmatprep.subr.bf16.mxu0 0
        %964 = vmatpush2.bf16.xpose.msra.mxu0 0
        %965 = vmatprep.subr.bf16.mxu0 0
        %966 = vmatpush2.bf16.xpose.msra.mxu0 0
        %967 = vmatprep.mubr.bf16.mxu0 0
        %968 = vmatmul.mubr.bf16.gmra.mxu0 %v892
        %v969 = vpop.f32.mrf.mxu0
        %v970 = vadd.f32 0.0, %v969
        %v971 = vpop.f32.mrf.mxu0
        %v972 = vpop.f32.mrf.mxu0
        %v973 = vpop.f32.mrf.mxu0
        %974 = vdwg.mxu0
        %vm975 = vcmp.ge.f32.partialorder %v930, 0.0
        %vm976 = vcmp.ge.f32.partialorder %v970, 0.0
        %v977 = vmul.f32 %v930, 0.01
        %v978 = vmul.f32 %v970, 0.01
        %v979 = vsel %vm975, %v930, %v977
        %v980 = vsel %vm976, %v970, %v978
        %v981 = vlaneseq
        %v982 = vand.u32 %v981, 127
        %vm983 = vcmp.lt.s32.totalorder %v982, 8
        %v984 = vsel %vm983, 1, 0
        %vm985 = vcmp.eq.s32.totalorder %v984, 1
        %v986 = vsel %vm985, %v979, -1e+30
        %v987 = vsel %vm985, %v980, -1e+30
        %vm988 = vcmask 64512
        %v989 = vsel %vm988, %v986, -inf
        %990 = vmax.xlane.f32.xlu0 %v989
        %v991 = vpop.xlane.xlu0 %990
        %v992 = vsel %vm988, %v987, -inf
        %993 = vmax.xlane.f32.xlu0 %v992
        %v994 = vpop.xlane.xlu0 %993
        %v995 = vsub.f32 %v986, %v991
        %v996 = vsub.f32 %v987, %v994
        %v997 = vmul.f32 %v995, 1.442695
        %v998 = vpow.pop %v997
        %v999 = vmul.f32 %v996, 1.442695
        %v1000 = vpow.pop %v999
        %v1001 = vsel %vm988, %v998, 0.0
        %1002 = vadd.xlane.f32.xlu0 %v1001
        %v1003 = vpop.xlane.xlu0 %1002
        %v1004 = vsel %vm988, %v1000, 0.0
        %1005 = vadd.xlane.f32.xlu0 %v1004
        %v1006 = vpop.xlane.xlu0 %1005
        %v1007 = vrcp.pop %v1003
        %v1008 = vmul.f32 %v998, %v1007
        %v1009 = vrcp.pop %v1006
        %v1010 = vmul.f32 %v1000, %v1009
        %v1011 = vpack.c.bf16 %v1008, %v1008
        %v1012 = vpack.c.bf16 %v1010, %v1010
        %v1014 = vunpack.c.l.b16 %v638
        %v1015 = vunpack.c.h.b16 %v638
        %v1016 = vpack.c.b16 %v1014, %v1014
        %v1017 = vpack.c.b16 %v1015, %v1015
        %v1019 = vsel %vm988, %v1011, 0
        %vm1021 = vcmask 1043456
        %v1023 = vsel %vm1021, %v1016, 0
        %1025 = vmatprep.subr.bf16.mxu0 0
        %1026 = vmatpush1.bf16.msra.mxu0 0
        %1027 = vmatprep.subr.bf16.mxu0 0
        %1028 = vmatpush1.bf16.msra.mxu0 0
        %1029 = vmatprep.subr.bf16.mxu0 0
        %1030 = vmatpush1.bf16.msra.mxu0 0
        %1031 = vmatprep.subr.bf16.mxu0 0
        %1032 = vmatpush1.bf16.msra.mxu0 0
        %1033 = vmatprep.subr.bf16.mxu0 0
        %1034 = vmatpush1.bf16.msra.mxu0 0
        %1035 = vmatprep.subr.bf16.mxu0 0
        %1036 = vmatpush1.bf16.msra.mxu0 0
        %1037 = vmatprep.subr.bf16.mxu0 0
        %1038 = vmatpush1.bf16.msra.mxu0 0
        %1039 = vmatprep.subr.bf16.mxu0 0
        %1040 = vmatpush1.bf16.msra.mxu0 %v1023
        %1041 = vmatprep.subr.bf16.mxu0 0
        %1042 = vmatpush2.bf16.msra.mxu0 0
        %1043 = vmatprep.subr.bf16.mxu0 0
        %1044 = vmatpush2.bf16.msra.mxu0 0
        %1045 = vmatprep.subr.bf16.mxu0 0
        %1046 = vmatpush2.bf16.msra.mxu0 0
        %1047 = vmatprep.subr.bf16.mxu0 0
        %1048 = vmatpush2.bf16.msra.mxu0 0
        %1049 = vmatprep.subr.bf16.mxu0 0
        %1050 = vmatpush2.bf16.msra.mxu0 0
        %1051 = vmatprep.subr.bf16.mxu0 0
        %1052 = vmatpush2.bf16.msra.mxu0 0
        %1053 = vmatprep.subr.bf16.mxu0 0
        %1054 = vmatpush2.bf16.msra.mxu0 0
        %1055 = vmatprep.subr.bf16.mxu0 0
        %1056 = vmatpush2.bf16.msra.mxu0 0
        %1057 = vmatprep.mubr.bf16.mxu0 0
        %1058 = vmatmul.mubr.bf16.gmra.mxu0 %v1019
        %v1059 = vpop.f32.mrf.mxu0
        %v1060 = vadd.f32 0.0, %v1059
        %v1061 = vpop.f32.mrf.mxu0
        %v1062 = vpop.f32.mrf.mxu0
        %v1063 = vpop.f32.mrf.mxu0
        %1064 = vdwg.mxu0
        %v1066 = vsel %vm988, %v1012, 0
        %v1069 = vsel %vm1021, %v1017, 0
        %1071 = vmatprep.subr.bf16.mxu0 0
        %1072 = vmatpush1.bf16.msra.mxu0 0
        %1073 = vmatprep.subr.bf16.mxu0 0
        %1074 = vmatpush1.bf16.msra.mxu0 0
        %1075 = vmatprep.subr.bf16.mxu0 0
        %1076 = vmatpush1.bf16.msra.mxu0 0
        %1077 = vmatprep.subr.bf16.mxu0 0
        %1078 = vmatpush1.bf16.msra.mxu0 0
        %1079 = vmatprep.subr.bf16.mxu0 0
        %1080 = vmatpush1.bf16.msra.mxu0 0
        %1081 = vmatprep.subr.bf16.mxu0 0
        %1082 = vmatpush1.bf16.msra.mxu0 0
        %1083 = vmatprep.subr.bf16.mxu0 0
        %1084 = vmatpush1.bf16.msra.mxu0 0
        %1085 = vmatprep.subr.bf16.mxu0 0
        %1086 = vmatpush1.bf16.msra.mxu0 %v1069
        %1087 = vmatprep.subr.bf16.mxu0 0
        %1088 = vmatpush2.bf16.msra.mxu0 0
        %1089 = vmatprep.subr.bf16.mxu0 0
        %1090 = vmatpush2.bf16.msra.mxu0 0
        %1091 = vmatprep.subr.bf16.mxu0 0
        %1092 = vmatpush2.bf16.msra.mxu0 0
        %1093 = vmatprep.subr.bf16.mxu0 0
        %1094 = vmatpush2.bf16.msra.mxu0 0
        %1095 = vmatprep.subr.bf16.mxu0 0
        %1096 = vmatpush2.bf16.msra.mxu0 0
        %1097 = vmatprep.subr.bf16.mxu0 0
        %1098 = vmatpush2.bf16.msra.mxu0 0
        %1099 = vmatprep.subr.bf16.mxu0 0
        %1100 = vmatpush2.bf16.msra.mxu0 0
        %1101 = vmatprep.subr.bf16.mxu0 0
        %1102 = vmatpush2.bf16.msra.mxu0 0
        %1103 = vmatprep.mubr.bf16.mxu0 0
        %1104 = vmatmul.mubr.bf16.gmra.mxu0 %v1066
        %v1105 = vpop.f32.mrf.mxu0
        %v1106 = vadd.f32 0.0, %v1105
        %v1107 = vpop.f32.mrf.mxu0
        %v1108 = vpop.f32.mrf.mxu0
        %v1109 = vpop.f32.mrf.mxu0
        %1110 = vdwg.mxu0
        %v1111 = vpack.c.bf16 %v1106, %v1060
        %v1112 = vld [vmem:[%s516] sm:$0xff]
        %v1113 = vld [vmem:[%s516 + $0x8] sm:$0xff]
        %v1114 = vld [vmem:[%s516 + $0x10] sm:$0xff]
        %v1115 = vld [vmem:[%s516 + $0x18] sm:$0xff]
        %v1116 = vld [vmem:[%s516 + $0x20] sm:$0xff]
        %v1117 = vld [vmem:[%s516 + $0x28] sm:$0xff]
        %v1118 = vld [vmem:[%s516 + $0x30] sm:$0xff]
        %v1119 = vld [vmem:[%s516 + $0x38] sm:$0xff]
        %v1120 = vld [vmem:[%s516 + $0x40] sm:$0xff]
        %v1121 = vld [vmem:[%s516 + $0x48] sm:$0xff]
        %v1122 = vld [vmem:[%s516 + $0x50] sm:$0xff]
        %v1123 = vld [vmem:[%s516 + $0x58] sm:$0xff]
        %v1124 = vld [vmem:[%s516 + $0x60] sm:$0xff]
        %v1125 = vld [vmem:[%s516 + $0x68] sm:$0xff]
        %v1126 = vld [vmem:[%s516 + $0x70] sm:$0xff]
        %v1127 = vld [vmem:[%s516 + $0x78] sm:$0xff]
        %v1128 = vld [vmem:[%s619] sm:$0x3]
        %v1130 = vlaneseq
        %v1131 = vshrl.u32 %v1130, 7
        %v1132 = vsub.s32 0, %v1131
        %v1133 = vrot.slane %v1128, %v1132
        %v1134 = vlaneseq
        %v1135 = vshrl.u32 %v1134, 7
        %v1136 = vsub.s32 1, %v1135
        %v1137 = vrot.slane %v1128, %v1136
        %v1156 = vunpack.c.l.b16 %v1112
        %v1157 = vunpack.c.h.b16 %v1112
        %v1158 = vunpack.c.l.b16 %v1113
        %v1159 = vunpack.c.h.b16 %v1113
        %v1160 = vunpack.c.l.b16 %v1114
        %v1161 = vunpack.c.h.b16 %v1114
        %v1162 = vunpack.c.l.b16 %v1115
        %v1163 = vunpack.c.h.b16 %v1115
        %v1164 = vunpack.c.l.b16 %v1116
        %v1165 = vunpack.c.h.b16 %v1116
        %v1166 = vunpack.c.l.b16 %v1117
        %v1167 = vunpack.c.h.b16 %v1117
        %v1168 = vunpack.c.l.b16 %v1118
        %v1169 = vunpack.c.h.b16 %v1118
        %v1170 = vunpack.c.l.b16 %v1119
        %v1171 = vunpack.c.h.b16 %v1119
        %v1172 = vunpack.c.l.b16 %v1120
        %v1173 = vunpack.c.h.b16 %v1120
        %v1174 = vunpack.c.l.b16 %v1121
        %v1175 = vunpack.c.h.b16 %v1121
        %v1176 = vunpack.c.l.b16 %v1122
        %v1177 = vunpack.c.h.b16 %v1122
        %v1178 = vunpack.c.l.b16 %v1123
        %v1179 = vunpack.c.h.b16 %v1123
        %v1180 = vunpack.c.l.b16 %v1124
        %v1181 = vunpack.c.h.b16 %v1124
        %v1182 = vunpack.c.l.b16 %v1125
        %v1183 = vunpack.c.h.b16 %v1125
        %v1184 = vunpack.c.l.b16 %v1126
        %v1185 = vunpack.c.h.b16 %v1126
        %v1186 = vunpack.c.l.b16 %v1127
        %v1187 = vunpack.c.h.b16 %v1127
        %v1188 = vpack.c.b16 %v1158, %v1156
        %v1189 = vpack.c.b16 %v1159, %v1157
        %v1190 = vpack.c.b16 %v1162, %v1160
        %v1191 = vpack.c.b16 %v1163, %v1161
        %v1192 = vpack.c.b16 %v1166, %v1164
        %v1193 = vpack.c.b16 %v1167, %v1165
        %v1194 = vpack.c.b16 %v1170, %v1168
        %v1195 = vpack.c.b16 %v1171, %v1169
        %v1196 = vpack.c.b16 %v1174, %v1172
        %v1197 = vpack.c.b16 %v1175, %v1173
        %v1198 = vpack.c.b16 %v1178, %v1176
        %v1199 = vpack.c.b16 %v1179, %v1177
        %v1200 = vpack.c.b16 %v1182, %v1180
        %v1201 = vpack.c.b16 %v1183, %v1181
        %v1202 = vpack.c.b16 %v1186, %v1184
        %v1203 = vpack.c.b16 %v1187, %v1185
        %1220 = vmatprep.subr.bf16.mxu0 %v1203
        %1221 = vmatpush1.bf16.msra.mxu0 %v1202
        %1222 = vmatprep.subr.bf16.mxu0 %v1201
        %1223 = vmatpush1.bf16.msra.mxu0 %v1200
        %1224 = vmatprep.subr.bf16.mxu0 %v1199
        %1225 = vmatpush1.bf16.msra.mxu0 %v1198
        %1226 = vmatprep.subr.bf16.mxu0 %v1197
        %1227 = vmatpush1.bf16.msra.mxu0 %v1196
        %1228 = vmatprep.subr.bf16.mxu0 %v1195
        %1229 = vmatpush1.bf16.msra.mxu0 %v1194
        %1230 = vmatprep.subr.bf16.mxu0 %v1193
        %1231 = vmatpush1.bf16.msra.mxu0 %v1192
        %1232 = vmatprep.subr.bf16.mxu0 %v1191
        %1233 = vmatpush1.bf16.msra.mxu0 %v1190
        %1234 = vmatprep.subr.bf16.mxu0 %v1189
        %1235 = vmatpush1.bf16.msra.mxu0 %v1188
        %1236 = vmatprep.subr.bf16.mxu0 0
        %1237 = vmatpush2.bf16.msra.mxu0 0
        %1238 = vmatprep.subr.bf16.mxu0 0
        %1239 = vmatpush2.bf16.msra.mxu0 0
        %1240 = vmatprep.subr.bf16.mxu0 0
        %1241 = vmatpush2.bf16.msra.mxu0 0
        %1242 = vmatprep.subr.bf16.mxu0 0
        %1243 = vmatpush2.bf16.msra.mxu0 0
        %1244 = vmatprep.subr.bf16.mxu0 0
        %1245 = vmatpush2.bf16.msra.mxu0 0
        %1246 = vmatprep.subr.bf16.mxu0 0
        %1247 = vmatpush2.bf16.msra.mxu0 0
        %1248 = vmatprep.subr.bf16.mxu0 0
        %1249 = vmatpush2.bf16.msra.mxu0 0
        %1250 = vmatprep.subr.bf16.mxu0 0
        %1251 = vmatpush2.bf16.msra.mxu0 0
        %1252 = vmatprep.mubr.bf16.mxu0 0
        %1253 = vmatmul.mubr.bf16.gmra.mxu0 %v1111
        %v1254 = vpop.f32.mrf.mxu0
        %v1255 = vadd.f32 %v1133, %v1254
        %v1256 = vpop.f32.mrf.mxu0
        %v1257 = vadd.f32 %v1137, %v1256
        %v1258 = vpop.f32.mrf.mxu0
        %v1259 = vadd.f32 %v1133, %v1258
        %v1260 = vpop.f32.mrf.mxu0
        %v1261 = vadd.f32 %v1137, %v1260
        %1262 = vdwg.mxu0
        %v1263 = vxor.u32 %v1255, 2147483648
        %v1264 = vxor.u32 %v1259, 2147483648
        %v1265 = vmul.f32 %v1263, 1.442695
        %v1266 = vpow.pop %v1265
        %v1267 = vmul.f32 %v1264, 1.442695
        %v1268 = vpow.pop %v1267
        %v1269 = vadd.f32 %v1266, 1.0
        %v1270 = vadd.f32 %v1268, 1.0
        %v1271 = vrcp.pop %v1269
        %v1272 = vmul.f32 1.0, %v1271
        %v1273 = vrcp.pop %v1270
        %v1274 = vmul.f32 1.0, %v1273
        %v1275 = vxor.u32 %v1257, 2147483648
        %v1276 = vxor.u32 %v1261, 2147483648
        %v1277 = vmul.f32 %v1275, 1.442695
        %v1278 = vpow.pop %v1277
        %v1279 = vmul.f32 %v1276, 1.442695
        %v1280 = vpow.pop %v1279
        %v1281 = vadd.f32 %v1278, 1.0
        %v1282 = vadd.f32 %v1280, 1.0
        %v1283 = vrcp.pop %v1281
        %v1284 = vmul.f32 1.0, %v1283
        %v1285 = vrcp.pop %v1282
        %v1286 = vmul.f32 1.0, %v1285
        %v1287 = vmul.f32 %v1272, %v636
        %v1288 = vmul.f32 %v1274, %v637
        %v1289 = vpack.c.bf16 %v1288, %v1287
        %v1290 = vld [vmem:[%s525] sm:$0xf]
        %v1291 = vld [vmem:[%s525 + $0x4] sm:$0xf]
        %v1292 = vld [vmem:[%s525 + $0x8] sm:$0xf]
        %v1293 = vld [vmem:[%s525 + $0xc] sm:$0xf]
        %v1294 = vld [vmem:[%s525 + $0x10] sm:$0xf]
        %v1295 = vld [vmem:[%s525 + $0x14] sm:$0xf]
        %v1296 = vld [vmem:[%s525 + $0x18] sm:$0xf]
        %v1297 = vld [vmem:[%s525 + $0x1c] sm:$0xf]
        %v1298 = vld [vmem:[%s525 + $0x20] sm:$0xf]
        %v1299 = vld [vmem:[%s525 + $0x24] sm:$0xf]
        %v1300 = vld [vmem:[%s525 + $0x28] sm:$0xf]
        %v1301 = vld [vmem:[%s525 + $0x2c] sm:$0xf]
        %v1302 = vld [vmem:[%s525 + $0x30] sm:$0xf]
        %v1303 = vld [vmem:[%s525 + $0x34] sm:$0xf]
        %v1304 = vld [vmem:[%s525 + $0x38] sm:$0xf]
        %v1305 = vld [vmem:[%s525 + $0x3c] sm:$0xf]
        %v1322 = vunpack.c.l.b16 %v1290
        %v1323 = vunpack.c.l.b16 %v1291
        %v1324 = vunpack.c.l.b16 %v1292
        %v1325 = vunpack.c.l.b16 %v1293
        %v1326 = vunpack.c.l.b16 %v1294
        %v1327 = vunpack.c.l.b16 %v1295
        %v1328 = vunpack.c.l.b16 %v1296
        %v1329 = vunpack.c.l.b16 %v1297
        %v1330 = vunpack.c.l.b16 %v1298
        %v1331 = vunpack.c.l.b16 %v1299
        %v1332 = vunpack.c.l.b16 %v1300
        %v1333 = vunpack.c.l.b16 %v1301
        %v1334 = vunpack.c.l.b16 %v1302
        %v1335 = vunpack.c.l.b16 %v1303
        %v1336 = vunpack.c.l.b16 %v1304
        %v1337 = vunpack.c.l.b16 %v1305
        %v1338 = vpack.c.b16 %v1323, %v1322
        %v1339 = vpack.c.b16 %v1325, %v1324
        %v1340 = vpack.c.b16 %v1327, %v1326
        %v1341 = vpack.c.b16 %v1329, %v1328
        %v1342 = vpack.c.b16 %v1331, %v1330
        %v1343 = vpack.c.b16 %v1333, %v1332
        %v1344 = vpack.c.b16 %v1335, %v1334
        %v1345 = vpack.c.b16 %v1337, %v1336
        %1354 = vmatprep.subr.bf16.mxu0 0
        %1355 = vmatpush1.bf16.msra.mxu0 %v1345
        %1356 = vmatprep.subr.bf16.mxu0 0
        %1357 = vmatpush1.bf16.msra.mxu0 %v1344
        %1358 = vmatprep.subr.bf16.mxu0 0
        %1359 = vmatpush1.bf16.msra.mxu0 %v1343
        %1360 = vmatprep.subr.bf16.mxu0 0
        %1361 = vmatpush1.bf16.msra.mxu0 %v1342
        %1362 = vmatprep.subr.bf16.mxu0 0
        %1363 = vmatpush1.bf16.msra.mxu0 %v1341
        %1364 = vmatprep.subr.bf16.mxu0 0
        %1365 = vmatpush1.bf16.msra.mxu0 %v1340
        %1366 = vmatprep.subr.bf16.mxu0 0
        %1367 = vmatpush1.bf16.msra.mxu0 %v1339
        %1368 = vmatprep.subr.bf16.mxu0 0
        %1369 = vmatpush1.bf16.msra.mxu0 %v1338
        %1370 = vmatprep.subr.bf16.mxu0 0
        %1371 = vmatpush2.bf16.msra.mxu0 0
        %1372 = vmatprep.subr.bf16.mxu0 0
        %1373 = vmatpush2.bf16.msra.mxu0 0
        %1374 = vmatprep.subr.bf16.mxu0 0
        %1375 = vmatpush2.bf16.msra.mxu0 0
        %1376 = vmatprep.subr.bf16.mxu0 0
        %1377 = vmatpush2.bf16.msra.mxu0 0
        %1378 = vmatprep.subr.bf16.mxu0 0
        %1379 = vmatpush2.bf16.msra.mxu0 0
        %1380 = vmatprep.subr.bf16.mxu0 0
        %1381 = vmatpush2.bf16.msra.mxu0 0
        %1382 = vmatprep.subr.bf16.mxu0 0
        %1383 = vmatpush2.bf16.msra.mxu0 0
        %1384 = vmatprep.subr.bf16.mxu0 0
        %1385 = vmatpush2.bf16.msra.mxu0 0
        %1386 = vmatprep.mubr.bf16.mxu0 0
        %1387 = vmatmul.mubr.bf16.gmra.mxu0 %v1289
        %v1388 = vpop.f32.mrf.mxu0
        %v1389 = vadd.f32 0.0, %v1388
        %v1390 = vpop.f32.mrf.mxu0
        %v1391 = vpop.f32.mrf.mxu0
        %v1392 = vadd.f32 0.0, %v1391
        %v1393 = vpop.f32.mrf.mxu0
        %1394 = vdwg.mxu0
        %v1395 = vadd.f32 %v773, %v1389
        %v1396 = vadd.f32 %v777, %v1392
        %v1397 = vld [vmem:[%s542] sm:$0x1]
        %v1399 = vlaneseq
        %v1400 = vshrl.u32 %v1399, 7
        %v1401 = vsub.s32 0, %v1400
        %v1402 = vrot.slane %v1397, %v1401
        %v1404 = vadd.f32 %v1395, %v1402
        %v1405 = vadd.f32 %v1396, %v1402
        %v1406 = vtanh.pop %v1404
        %v1407 = vtanh.pop %v1405
        %v1408 = vmul.f32 %v1284, %v636
        %v1409 = vmul.f32 %v1286, %v637
        %v1410 = vsub.f32 1.0, %v1284
        %v1411 = vsub.f32 1.0, %v1286
        %v1412 = vmul.f32 %v1410, %v1406
        %v1413 = vmul.f32 %v1411, %v1407
        %v1414 = vadd.f32 %v1408, %v1412
        %v1415 = vadd.f32 %v1409, %v1413
        %v1416 = vpack.c.bf16 %v1415, %v1414
        %v1417 = vld [vmem:[%s534] sm:$0xf]
        %v1418 = vld [vmem:[%s534 + $0x4] sm:$0xf]
        %v1419 = vld [vmem:[%s534 + $0x8] sm:$0xf]
        %v1420 = vld [vmem:[%s534 + $0xc] sm:$0xf]
        %v1421 = vld [vmem:[%s534 + $0x10] sm:$0xf]
        %v1422 = vld [vmem:[%s534 + $0x14] sm:$0xf]
        %v1423 = vld [vmem:[%s534 + $0x18] sm:$0xf]
        %v1424 = vld [vmem:[%s534 + $0x1c] sm:$0xf]
        %v1425 = vld [vmem:[%s534 + $0x20] sm:$0xf]
        %v1426 = vld [vmem:[%s534 + $0x24] sm:$0xf]
        %v1427 = vld [vmem:[%s534 + $0x28] sm:$0xf]
        %v1428 = vld [vmem:[%s534 + $0x2c] sm:$0xf]
        %v1429 = vld [vmem:[%s534 + $0x30] sm:$0xf]
        %v1430 = vld [vmem:[%s534 + $0x34] sm:$0xf]
        %v1431 = vld [vmem:[%s534 + $0x38] sm:$0xf]
        %v1432 = vld [vmem:[%s534 + $0x3c] sm:$0xf]
        %v1433 = vld [vmem:[%s622] sm:$0x1]
        %v1435 = vlaneseq
        %v1436 = vshrl.u32 %v1435, 7
        %v1437 = vsub.s32 0, %v1436
        %v1438 = vrot.slane %v1433, %v1437
        %v1456 = vunpack.c.l.b16 %v1417
        %v1457 = vunpack.c.l.b16 %v1418
        %v1458 = vunpack.c.l.b16 %v1419
        %v1459 = vunpack.c.l.b16 %v1420
        %v1460 = vunpack.c.l.b16 %v1421
        %v1461 = vunpack.c.l.b16 %v1422
        %v1462 = vunpack.c.l.b16 %v1423
        %v1463 = vunpack.c.l.b16 %v1424
        %v1464 = vunpack.c.l.b16 %v1425
        %v1465 = vunpack.c.l.b16 %v1426
        %v1466 = vunpack.c.l.b16 %v1427
        %v1467 = vunpack.c.l.b16 %v1428
        %v1468 = vunpack.c.l.b16 %v1429
        %v1469 = vunpack.c.l.b16 %v1430
        %v1470 = vunpack.c.l.b16 %v1431
        %v1471 = vunpack.c.l.b16 %v1432
        %v1472 = vpack.c.b16 %v1457, %v1456
        %v1473 = vpack.c.b16 %v1459, %v1458
        %v1474 = vpack.c.b16 %v1461, %v1460
        %v1475 = vpack.c.b16 %v1463, %v1462
        %v1476 = vpack.c.b16 %v1465, %v1464
        %v1477 = vpack.c.b16 %v1467, %v1466
        %v1478 = vpack.c.b16 %v1469, %v1468
        %v1479 = vpack.c.b16 %v1471, %v1470
        %1488 = vmatprep.subr.bf16.mxu0 0
        %1489 = vmatpush1.bf16.msra.mxu0 %v1479
        %1490 = vmatprep.subr.bf16.mxu0 0
        %1491 = vmatpush1.bf16.msra.mxu0 %v1478
        %1492 = vmatprep.subr.bf16.mxu0 0
        %1493 = vmatpush1.bf16.msra.mxu0 %v1477
        %1494 = vmatprep.subr.bf16.mxu0 0
        %1495 = vmatpush1.bf16.msra.mxu0 %v1476
        %1496 = vmatprep.subr.bf16.mxu0 0
        %1497 = vmatpush1.bf16.msra.mxu0 %v1475
        %1498 = vmatprep.subr.bf16.mxu0 0
        %1499 = vmatpush1.bf16.msra.mxu0 %v1474
        %1500 = vmatprep.subr.bf16.mxu0 0
        %1501 = vmatpush1.bf16.msra.mxu0 %v1473
        %1502 = vmatprep.subr.bf16.mxu0 0
        %1503 = vmatpush1.bf16.msra.mxu0 %v1472
        %1504 = vmatprep.subr.bf16.mxu0 0
        %1505 = vmatpush2.bf16.msra.mxu0 0
        %1506 = vmatprep.subr.bf16.mxu0 0
        %1507 = vmatpush2.bf16.msra.mxu0 0
        %1508 = vmatprep.subr.bf16.mxu0 0
        %1509 = vmatpush2.bf16.msra.mxu0 0
        %1510 = vmatprep.subr.bf16.mxu0 0
        %1511 = vmatpush2.bf16.msra.mxu0 0
        %1512 = vmatprep.subr.bf16.mxu0 0
        %1513 = vmatpush2.bf16.msra.mxu0 0
        %1514 = vmatprep.subr.bf16.mxu0 0
        %1515 = vmatpush2.bf16.msra.mxu0 0
        %1516 = vmatprep.subr.bf16.mxu0 0
        %1517 = vmatpush2.bf16.msra.mxu0 0
        %1518 = vmatprep.subr.bf16.mxu0 0
        %1519 = vmatpush2.bf16.msra.mxu0 0
        %1520 = vmatprep.mubr.bf16.mxu0 0
        %1521 = vmatmul.mubr.bf16.gmra.mxu0 %v1416
        %v1522 = vpop.f32.mrf.mxu0
        %v1523 = vadd.f32 %v1438, %v1522
        %v1524 = vpop.f32.mrf.mxu0
        %v1525 = vpop.f32.mrf.mxu0
        %v1526 = vadd.f32 %v1438, %v1525
        %v1527 = vpop.f32.mrf.mxu0
        %1528 = vdwg.mxu0
        %1529 = vst [vmem:[#allocation2] sm:$0xff] %v1414
        %1530 = vst [vmem:[#allocation2 + $0x8] sm:$0xff] %v1415
        %1531 = vst [vmem:[#allocation3] sm:$0xff] %v1523
        %1532 = vst [vmem:[#allocation3 + $0x8] sm:$0xff] %v1526
        %1533 = vst [vmem:[%s612] sm:$0xff] %v1523
        %1534 = vst [vmem:[%s612 + $0x8] sm:$0xff] %v1526
        %s1535 = sand.u32 %s297, 1
        %s1536 = scalar_lea.sflag [#allocation6], %s1535
        %s1537 = sand.u32 %s297, 1
        %s1538 = smul.addr %s1537, 16
        %s1539 = scalar_lea.vmem [#allocation16], %s1538
        // Predicated region
        $region93: #{tpu_custom_call.1} parent=59 // pred_check
          %p1540 = pneg %p307
        $region94: #{tpu_custom_call.1} parent=59 // pred_check_branch
          %1542 = sbr.rel (%p1540) target = $region96
        $region95: #{tpu_custom_call.1} parent=59 // pred_region
          %s1544 = ssub.s32 256, 256
          %1545 = vsyncadd %s1536, %s1544
          %s1546 = smul.addr %s34, 2
          %s1547 = smul.addr %s1546, 128
          %s1548 = scalar_lea.hbm %s10, %s1547
          %s1549 = sshll.u32 %s1539, 4
          %s1550 = int_to_ptr.vmem [resolvable:$true] %s1549
          %1555 = dma.vmem_to_hbm [thread:$0]  %s1550, 256, %s1548, %s1536, 128, 128, 8
        $region96: #{tpu_custom_call.1} parent=59 // pred_fallthru
          _
      $region60: #{tpu_custom_call.1} parent=5 // pred_fallthru
        _
      %p1556 = scmp.le.s32.totalorder 2, %s29
      // Predicated region
      $region97: #{tpu_custom_call.1} parent=5 // pred_check
        %p1557 = pneg %p1556
      $region98: #{tpu_custom_call.1} parent=5 // pred_check_branch
        %1559 = sbr.rel (%p1557) target = $region100
      $region99: #{tpu_custom_call.1} parent=5 // pred_region
        %s1560 = ssub.s32 %s29, 2
        // Predicated region
        $region101: #{tpu_custom_call.1} parent=99 // pred_check
          %p1561 = pneg %p313
        $region102: #{tpu_custom_call.1} parent=99 // pred_check_branch
          %1563 = sbr.rel (%p1561) target = $region104
        $region103: #{tpu_custom_call.1} parent=99 // pred_region
          %s1564 = sand.u32 %s298, 1
          %s1565 = scalar_lea.sflag [#allocation6], %s1564
          %s1566 = sand.u32 %s298, 1
          %s1567 = smul.addr %s1566, 16
          %s1568 = scalar_lea.vmem [#allocation16], %s1567
          %1569 = dma.done %s1565, 256
        $region104: #{tpu_custom_call.1} parent=99 // pred_fallthru
          _
      $region100: #{tpu_custom_call.1} parent=5 // pred_fallthru
        _
    $region6: #{tpu_custom_call.1} parent=1 // loop_footer
      %s33 = sadd.s32 1, %s29
    $region7: #{tpu_custom_call.1} parent=1 // loop_footer_branch
      %28 = sbr.rel target = $region3
    $region8: #{tpu_custom_call.1} parent=1 // loop_exit
      _
    %1570 = vsyncpa [#allocation5], 1
    %s1571 = scalar_lea.sflag [#allocation5], 1
    %1572 = vsyncpa %s1571, 1
    %1573 = vsyncpa [#allocation8], 1
    %s1574 = scalar_lea.sflag [#allocation8], 1
    %1575 = vsyncpa %s1574, 1
    %1576 = vsyncpa [#allocation11], 1
    %s1577 = scalar_lea.sflag [#allocation11], 1
    %1578 = vsyncpa %s1577, 1
    %1579 = vsyncpa [#allocation14], 1
    %s1580 = scalar_lea.sflag [#allocation14], 1
    %1581 = vsyncpa %s1580, 1
    %1582 = vsyncpa [#allocation6], 1
    %s1583 = scalar_lea.sflag [#allocation6], 1
    %1584 = vsyncpa %s1583, 1

</llo_original>
